<compile_context>
chip_gen: v7x
topology: tpu7x:2x2x1
jax: 0.10.0
libtpu: 0.0.40
codegen_flags: <defaults>
</compile_context>

<pallas_src>
import functools

import jax
import jax.numpy as jnp
from jax.experimental import pallas as pl
from jax.experimental.pallas import tpu as pltpu


def _round_up(x, m):
    return ((x + m - 1) // m) * m


# ----------------------------------------------------------------------------
# Pallas kernel 1: fused projections
#   n_aux = relu([noisy|aux] @ W_map + b)      (1x1 conv_map)
#   q     = n_aux @ (W_q * scale)              (scale folded into weights)
#   k     = n_aux @ W_k
#   v     = noisy @ W_v
# ----------------------------------------------------------------------------
def _proj_kernel(xcat_ref, noisy_ref, wmap_ref, bmap_ref, wq_ref, wk_ref, wv_ref,
                 q_ref, k_ref, v_ref):
    n_aux = jnp.dot(xcat_ref[...], wmap_ref[...], preferred_element_type=jnp.float32)
    n_aux = jnp.maximum(n_aux + bmap_ref[...], 0.0).astype(xcat_ref.dtype)
    q_ref[...] = jnp.dot(n_aux, wq_ref[...],
                         preferred_element_type=jnp.float32).astype(q_ref.dtype)
    k_ref[...] = jnp.dot(n_aux, wk_ref[...],
                         preferred_element_type=jnp.float32).astype(k_ref.dtype)
    v_ref[...] = jnp.dot(noisy_ref[...], wv_ref[...],
                         preferred_element_type=jnp.float32).astype(v_ref.dtype)


def pallas_fused_projection(x_cat, noisy_flat, w_map, b_map, w_q, w_k, w_v,
                            *, vmem_budget_bytes=16 * 1024 * 1024):
    M, two_c = x_cat.shape
    c = w_map.shape[1]
    itemsize = jnp.dtype(x_cat.dtype).itemsize

    # Row tile sized against the VMEM budget (double-buffered in + out rows).
    bytes_per_row = 2 * itemsize * (two_c + c + 3 * c)
    tm = vmem_budget_bytes // bytes_per_row
    tm = max(8, min(1024, (tm // 8) * 8))
    tm = min(tm, _round_up(M, 8))
    grid = (pl.cdiv(M, tm),)

    cost = pl.CostEstimate(
        flops=10 * M * c * c,
        transcendentals=0,
        bytes_accessed=itemsize * (M * two_c + 4 * M * c + 5 * c * c + c),
    )

    row_spec = lambda width: pl.BlockSpec((tm, width), lambda i: (i, 0))
    full_spec = lambda r, col: pl.BlockSpec((r, col), lambda i: (0, 0))

    return pl.pallas_call(
        _proj_kernel,
        out_shape=(jax.ShapeDtypeStruct((M, c), x_cat.dtype),) * 3,
        grid=grid,
        in_specs=[
            row_spec(two_c),          # [noisy | aux] rows
            row_spec(c),              # noisy rows (for v)
            full_spec(two_c, c),      # W_map
            full_spec(1, c),          # b_map
            full_spec(c, c),          # W_q (pre-scaled)
            full_spec(c, c),          # W_k
            full_spec(c, c),          # W_v
        ],
        out_specs=(row_spec(c), row_spec(c), row_spec(c)),
        compiler_params=pltpu.CompilerParams(
            dimension_semantics=("parallel",),
            vmem_limit_bytes=32 * 1024 * 1024,
        ),
        cost_estimate=cost,
    )(x_cat, noisy_flat, w_map, b_map, w_q, w_k, w_v)


# ----------------------------------------------------------------------------
# Pallas kernel 2: block attention over a group of query blocks.
#   q : (gblk, bq, c)   k/v : (gblk, a, c)   kbias : (a, c)   out : (gblk, bq, c)
#   Per head (static unroll): sim = q_h k_h^T ; softmax ; out_h = p v_h.
# ----------------------------------------------------------------------------
def _attn_kernel(q_ref, k_ref, v_ref, kbias_ref, o_ref, *, heads):
    c = q_ref.shape[-1]
    d = c // heads
    q = q_ref[...]
    k = k_ref[...] + kbias_ref[...][None]      # rel-pos bias, all heads at once
    v = v_ref[...]

    outs = []
    for h in range(heads):                     # static unroll over heads
        sl = slice(h * d, (h + 1) * d)
        sim = jnp.einsum("gqd,gkd->gqk", q[..., sl], k[..., sl],
                         preferred_element_type=jnp.float32)
        sim = sim - jnp.max(sim, axis=-1, keepdims=True)
        p = jnp.exp(sim)
        p = p * pl.reciprocal(jnp.sum(p, axis=-1, keepdims=True), approx=True)
        outs.append(jnp.einsum("gqk,gkd->gqd", p, v[..., sl],
                               preferred_element_type=jnp.float32))

    o_ref[...] = jnp.concatenate(outs, axis=-1).astype(o_ref.dtype)


def _pick_group(n_blocks, bq, a, c, budget_bytes, itemsize=4, cap=64):
    """Largest divisor of n_blocks whose per-step VMEM estimate fits the budget."""
    per_block = itemsize * (
        2 * 2 * bq * c        # q + out tiles (double-buffered)
        + 2 * 2 * a * c       # k + v tiles  (double-buffered)
        + a * c               # biased k temporary
        + 2 * bq * a          # sim + probabilities (f32)
        + 2 * bq * c          # per-head partials + concat output
    )
    best = 1
    for g in range(1, min(n_blocks, cap) + 1):
        if n_blocks % g == 0 and g * per_block <= budget_bytes:
            best = g
    return best


def pallas_block_attention(q_blk, k_unf, v_unf, kbias, *, heads,
                           vmem_budget_bytes=8 * 1024 * 1024):
    n_blocks, bq, c = q_blk.shape
    a = k_unf.shape[1]
    itemsize = jnp.dtype(q_blk.dtype).itemsize

    gblk = _pick_group(n_blocks, bq, a, c, vmem_budget_bytes, itemsize=itemsize)
    grid = (n_blocks // gblk,)

    cost = pl.CostEstimate(
        flops=4 * n_blocks * bq * a * c,
        transcendentals=heads * n_blocks * bq * a,
        bytes_accessed=itemsize * (2 * n_blocks * bq * c
                                   + 2 * n_blocks * a * c + a * c),
    )

    kernel = functools.partial(_attn_kernel, heads=heads)
    blk_spec = lambda rows, width: pl.BlockSpec((gblk, rows, width),
                                                lambda i: (i, 0, 0))

    return pl.pallas_call(
        kernel,
        out_shape=jax.ShapeDtypeStruct((n_blocks, bq, c), q_blk.dtype),
        grid=grid,
        in_specs=[
            blk_spec(bq, c),                         # q blocks
            blk_spec(a, c),                          # k halo patches
            blk_spec(a, c),                          # v halo patches
            pl.BlockSpec((a, c), lambda i: (0, 0)),  # rel-pos bias (resident)
        ],
        out_specs=blk_spec(bq, c),
        compiler_params=pltpu.CompilerParams(
            dimension_semantics=("parallel",),
            vmem_limit_bytes=32 * 1024 * 1024,
        ),
        cost_estimate=cost,
    )(q_blk, k_unf, v_unf, kbias)


# ----------------------------------------------------------------------------
# Layout glue (pure JAX): block rearrangement and F.unfold halo extraction.
# ----------------------------------------------------------------------------
def _to_blocks(x_map, block):
    b, H, W, c = x_map.shape
    nh, nw = H // block, W // block
    xb = x_map.reshape(b, nh, block, nw, block, c)
    xb = jnp.transpose(xb, (0, 1, 3, 2, 4, 5))
    return xb.reshape(b * nh * nw, block * block, c)


def _to_halo_patches(x_map, block, halo):
    b, H, W, c = x_map.shape
    nh, nw = H // block, W // block
    win = block + 2 * halo
    xp = jnp.pad(x_map, ((0, 0), (halo, halo), (halo, halo), (0, 0)))
    idx_h = jnp.arange(nh)[:, None] * block + jnp.arange(win)[None, :]
    idx_w = jnp.arange(nw)[:, None] * block + jnp.arange(win)[None, :]
    rows = xp[:, idx_h]                       # (b, nh, win, Wp, c)
    patches = rows[:, :, :, idx_w]            # (b, nh, win, nw, win, c)
    patches = jnp.transpose(patches, (0, 1, 3, 2, 4, 5))
    return patches.reshape(b * nh * nw, win * win, c)


def _from_blocks(xb, b, H, W, block):
    nh, nw = H // block, W // block
    c = xb.shape[-1]
    x = xb.reshape(b, nh, nw, block, block, c)
    x = jnp.transpose(x, (0, 5, 1, 3, 2, 4))  # (b, c, nh, k1, nw, k2)
    return x.reshape(b, c, H, W)


# ----------------------------------------------------------------------------
# Parameter init (deterministic, mirrors the PyTorch __init__ shapes)
# ----------------------------------------------------------------------------
def init_afgsa_params(key, ch, block_size=8, halo_size=3, num_heads=4):
    head_ch = ch // num_heads
    win = block_size + 2 * halo_size
    k1, k2, k3, k4, k5, k6, k7 = jax.random.split(key, 7)
    std_map = (2.0 / (2 * ch)) ** 0.5
    std_qkv = (2.0 / ch) ** 0.5
    return {
        # 1x1 conv weights stored as (in_ch, out_ch) matrices
        "conv_map_w": jax.random.normal(k1, (2 * ch, ch), jnp.float32) * std_map,
        "conv_map_b": jax.random.normal(k2, (ch,), jnp.float32) * 0.01,
        "q_w": jax.random.normal(k3, (ch, ch), jnp.float32) * std_qkv,
        "k_w": jax.random.normal(k4, (ch, ch), jnp.float32) * std_qkv,
        "v_w": jax.random.normal(k5, (ch, ch), jnp.float32) * std_qkv,
        "rel_h": jax.random.normal(k6, (win, 1, head_ch // 2), jnp.float32),
        "rel_w": jax.random.normal(k7, (1, win, head_ch // 2), jnp.float32),
    }


# ----------------------------------------------------------------------------
# Forward pass
# ----------------------------------------------------------------------------
def afgsa_forward(params, noisy, aux, *, block_size=8, halo_size=3, num_heads=4,
                  use_pallas=True):
    b, c, h, w = noisy.shape
    assert c % num_heads == 0
    assert h % block_size == 0 and w % block_size == 0
    head_ch = c // num_heads
    win = block_size + 2 * halo_size
    a = win * win
    scale = float(head_ch) ** (-0.5)

    # NCHW -> NHWC
    noisy_nhwc = jnp.transpose(noisy, (0, 2, 3, 1))
    aux_nhwc = jnp.transpose(aux, (0, 2, 3, 1))
    x_cat = jnp.concatenate([noisy_nhwc, aux_nhwc], axis=-1).reshape(b * h * w, 2 * c)
    noisy_flat = noisy_nhwc.reshape(b * h * w, c)

    w_map = params["conv_map_w"]
    b_map = params["conv_map_b"].reshape(1, c)
    w_q = params["q_w"] * scale          # attention scale folded into q weights
    w_k = params["k_w"]
    w_v = params["v_w"]

    # relative position bias (identical for every head)
    bias_h = jnp.broadcast_to(params["rel_h"], (win, win, head_ch // 2))
    bias_w = jnp.broadcast_to(params["rel_w"], (win, win, head_ch // 2))
    kbias_head = jnp.concatenate([bias_h, bias_w], axis=-1).reshape(a, head_ch)
    kbias_full = jnp.tile(kbias_head, (1, num_heads)).astype(noisy.dtype)

    # projections
    if use_pallas:
        q_flat, k_flat, v_flat = pallas_fused_projection(
            x_cat, noisy_flat, w_map, b_map, w_q, w_k, w_v)
    else:
        n_aux = jnp.maximum(x_cat @ w_map + b_map, 0.0)
        q_flat = n_aux @ w_q
        k_flat = n_aux @ w_k
        v_flat = noisy_flat @ w_v

    # block / halo-patch layouts
    q_blk = _to_blocks(q_flat.reshape(b, h, w, c), block_size)
    k_unf = _to_halo_patches(k_flat.reshape(b, h, w, c), block_size, halo_size)
    v_unf = _to_halo_patches(v_flat.reshape(b, h, w, c), block_size, halo_size)

    # attention
    if use_pallas:
        out_blk = pallas_block_attention(q_blk, k_unf, v_unf, kbias_full,
                                         heads=num_heads)
    else:
        def split_heads(x):
            B, L, _ = x.shape
            xh = x.reshape(B, L, num_heads, head_ch)
            return jnp.transpose(xh, (0, 2, 1, 3)).reshape(B * num_heads, L, head_ch)

        qh = split_heads(q_blk)
        kh = split_heads(k_unf) + kbias_head[None]
        vh = split_heads(v_unf)
        sim = jnp.einsum("bid,bjd->bij", qh, kh)
        attn = jax.nn.softmax(sim, axis=-1)
        oh = jnp.einsum("bij,bjd->bid", attn, vh)
        B = q_blk.shape[0]
        oh = oh.reshape(B, num_heads, block_size * block_size, head_ch)
        out_blk = jnp.transpose(oh, (0, 2, 1, 3)).reshape(
            B, block_size * block_size, c)

    return _from_blocks(out_blk, b, h, w, block_size)


# ----------------------------------------------------------------------------
if __name__ == "__main__":
    key = jax.random.PRNGKey(0)
    kp, kn, ka = jax.random.split(key, 3)

    b, ch, h, w = 2, 16, 16, 16
    block_size, halo_size, num_heads = 8, 3, 4

    params = init_afgsa_params(kp, ch, block_size, halo_size, num_heads)
    noisy = jax.random.normal(kn, (b, ch, h, w), jnp.float32)
    aux = jax.random.normal(ka, (b, ch, h, w), jnp.float32)

    fwd = functools.partial(afgsa_forward, block_size=block_size,
                            halo_size=halo_size, num_heads=num_heads)

    out = jax.block_until_ready(fwd(params, noisy, aux, use_pallas=True))
    ref = jax.block_until_ready(fwd(params, noisy, aux, use_pallas=False))

    assert out.shape == (b, ch, h, w), out.shape
    max_err = float(jnp.max(jnp.abs(out - ref)))
    assert max_err < 1e-2, f"mismatch vs reference, max abs err = {max_err}"

    print("KERNEL_OK")
</pallas_src>

<mosaic_0001>
module attributes {stable_mosaic.version = 11 : i64} {
  func.func @_proj_kernel(%arg0: i32, %arg1: memref<512x32xf32, #tpu.memory_space<vmem>>, %arg2: memref<512x16xf32, #tpu.memory_space<vmem>>, %arg3: memref<32x16xf32, #tpu.memory_space<vmem>>, %arg4: memref<1x16xf32, #tpu.memory_space<vmem>>, %arg5: memref<16x16xf32, #tpu.memory_space<vmem>>, %arg6: memref<16x16xf32, #tpu.memory_space<vmem>>, %arg7: memref<16x16xf32, #tpu.memory_space<vmem>>, %arg8: memref<512x16xf32, #tpu.memory_space<vmem>>, %arg9: memref<512x16xf32, #tpu.memory_space<vmem>>, %arg10: memref<512x16xf32, #tpu.memory_space<vmem>>) attributes {dimension_semantics = [#tpu.dimension_semantics<parallel>], iteration_bounds = array<i64: 1>, scalar_prefetch = 0 : i64, scratch_operands = 0 : i64, tpu.core_type = #tpu.core_type<tc>, window_params = [{transform_indices = @transform_0, window_bounds = array<i64: 512, 32>}, {transform_indices = @transform_1, window_bounds = array<i64: 512, 16>}, {pipeline_mode = #tpu.pipeline_mode<synchronous>, transform_indices = @transform_2, window_bounds = array<i64: 32, 16>}, {pipeline_mode = #tpu.pipeline_mode<synchronous>, transform_indices = @transform_3, window_bounds = array<i64: 1, 16>}, {pipeline_mode = #tpu.pipeline_mode<synchronous>, transform_indices = @transform_4, window_bounds = array<i64: 16, 16>}, {pipeline_mode = #tpu.pipeline_mode<synchronous>, transform_indices = @transform_5, window_bounds = array<i64: 16, 16>}, {pipeline_mode = #tpu.pipeline_mode<synchronous>, transform_indices = @transform_6, window_bounds = array<i64: 16, 16>}, {transform_indices = @transform_7, window_bounds = array<i64: 512, 16>}, {transform_indices = @transform_8, window_bounds = array<i64: 512, 16>}, {transform_indices = @transform_9, window_bounds = array<i64: 512, 16>}]} {
    %c0 = arith.constant 0 : index
    %c0_0 = arith.constant 0 : index
    %0 = vector.load %arg1[%c0, %c0_0] : memref<512x32xf32, #tpu.memory_space<vmem>>, vector<512x32xf32>
    %c0_1 = arith.constant 0 : index
    %c0_2 = arith.constant 0 : index
    %1 = vector.load %arg3[%c0_1, %c0_2] : memref<32x16xf32, #tpu.memory_space<vmem>>, vector<32x16xf32>
    %cst = arith.constant dense<0.000000e+00> : vector<512x16xf32>
    %2 = tpu.matmul %0, %1, %cst {dimension_numbers = #tpu.dot_dimension_numbers<[1], [0], [0], [1], [0, 0, 1, 1], [], []>} : vector<512x32xf32>, vector<32x16xf32>, vector<512x16xf32> -> vector<512x16xf32>
    %c0_3 = arith.constant 0 : index
    %c0_4 = arith.constant 0 : index
    %3 = vector.load %arg4[%c0_3, %c0_4] : memref<1x16xf32, #tpu.memory_space<vmem>>, vector<1x16xf32>
    %4 = vector.broadcast %3 : vector<1x16xf32> to vector<512x16xf32>
    %5 = arith.addf %2, %4 : vector<512x16xf32>
    %cst_5 = arith.constant 0.000000e+00 : f32
    %6 = vector.broadcast %cst_5 : f32 to vector<512x16xf32>
    %7 = arith.maximumf %5, %6 : vector<512x16xf32>
    %c0_6 = arith.constant 0 : index
    %c0_7 = arith.constant 0 : index
    %8 = vector.load %arg5[%c0_6, %c0_7] : memref<16x16xf32, #tpu.memory_space<vmem>>, vector<16x16xf32>
    %cst_8 = arith.constant dense<0.000000e+00> : vector<512x16xf32>
    %9 = tpu.matmul %7, %8, %cst_8 {dimension_numbers = #tpu.dot_dimension_numbers<[1], [0], [0], [1], [0, 0, 1, 1], [], []>} : vector<512x16xf32>, vector<16x16xf32>, vector<512x16xf32> -> vector<512x16xf32>
    %c0_9 = arith.constant 0 : index
    %c0_10 = arith.constant 0 : index
    %10 = vector.load %arg8[%c0_9, %c0_10] : memref<512x16xf32, #tpu.memory_space<vmem>>, vector<512x16xf32>
    tpu.vector_store %arg8[%c0_9, %c0_10], %9 {strides = array<i32>} : memref<512x16xf32, #tpu.memory_space<vmem>>, vector<512x16xf32>,
    %c0_11 = arith.constant 0 : index
    %c0_12 = arith.constant 0 : index
    %11 = vector.load %arg6[%c0_11, %c0_12] : memref<16x16xf32, #tpu.memory_space<vmem>>, vector<16x16xf32>
    %cst_13 = arith.constant dense<0.000000e+00> : vector<512x16xf32>
    %12 = tpu.matmul %7, %11, %cst_13 {dimension_numbers = #tpu.dot_dimension_numbers<[1], [0], [0], [1], [0, 0, 1, 1], [], []>} : vector<512x16xf32>, vector<16x16xf32>, vector<512x16xf32> -> vector<512x16xf32>
    %c0_14 = arith.constant 0 : index
    %c0_15 = arith.constant 0 : index
    %13 = vector.load %arg9[%c0_14, %c0_15] : memref<512x16xf32, #tpu.memory_space<vmem>>, vector<512x16xf32>
    tpu.vector_store %arg9[%c0_14, %c0_15], %12 {strides = array<i32>} : memref<512x16xf32, #tpu.memory_space<vmem>>, vector<512x16xf32>,
    %c0_16 = arith.constant 0 : index
    %c0_17 = arith.constant 0 : index
    %14 = vector.load %arg2[%c0_16, %c0_17] : memref<512x16xf32, #tpu.memory_space<vmem>>, vector<512x16xf32>
    %c0_18 = arith.constant 0 : index
    %c0_19 = arith.constant 0 : index
    %15 = vector.load %arg7[%c0_18, %c0_19] : memref<16x16xf32, #tpu.memory_space<vmem>>, vector<16x16xf32>
    %cst_20 = arith.constant dense<0.000000e+00> : vector<512x16xf32>
    %16 = tpu.matmul %14, %15, %cst_20 {dimension_numbers = #tpu.dot_dimension_numbers<[1], [0], [0], [1], [0, 0, 1, 1], [], []>} : vector<512x16xf32>, vector<16x16xf32>, vector<512x16xf32> -> vector<512x16xf32>
    %c0_21 = arith.constant 0 : index
    %c0_22 = arith.constant 0 : index
    %17 = vector.load %arg10[%c0_21, %c0_22] : memref<512x16xf32, #tpu.memory_space<vmem>>, vector<512x16xf32>
    tpu.vector_store %arg10[%c0_21, %c0_22], %16 {strides = array<i32>} : memref<512x16xf32, #tpu.memory_space<vmem>>, vector<512x16xf32>,
    return
  }
  func.func @transform_0(%arg0: i32) -> (i32, i32) {
    %c0_i32 = arith.constant 0 : i32
    %c0_i32_0 = arith.constant 0 : i32
    return %arg0, %c0_i32 : i32, i32
  }
  func.func @transform_1(%arg0: i32) -> (i32, i32) {
    %c0_i32 = arith.constant 0 : i32
    %c0_i32_0 = arith.constant 0 : i32
    return %arg0, %c0_i32 : i32, i32
  }
  func.func @transform_2(%arg0: i32) -> (i32, i32) {
    %c0_i32 = arith.constant 0 : i32
    %c0_i32_0 = arith.constant 0 : i32
    %c0_i32_1 = arith.constant 0 : i32
    return %c0_i32, %c0_i32_0 : i32, i32
  }
  func.func @transform_3(%arg0: i32) -> (i32, i32) {
    %c0_i32 = arith.constant 0 : i32
    %c0_i32_0 = arith.constant 0 : i32
    %c0_i32_1 = arith.constant 0 : i32
    return %c0_i32, %c0_i32_0 : i32, i32
  }
  func.func @transform_4(%arg0: i32) -> (i32, i32) {
    %c0_i32 = arith.constant 0 : i32
    %c0_i32_0 = arith.constant 0 : i32
    %c0_i32_1 = arith.constant 0 : i32
    return %c0_i32, %c0_i32_0 : i32, i32
  }
  func.func @transform_5(%arg0: i32) -> (i32, i32) {
    %c0_i32 = arith.constant 0 : i32
    %c0_i32_0 = arith.constant 0 : i32
    %c0_i32_1 = arith.constant 0 : i32
    return %c0_i32, %c0_i32_0 : i32, i32
  }
  func.func @transform_6(%arg0: i32) -> (i32, i32) {
    %c0_i32 = arith.constant 0 : i32
    %c0_i32_0 = arith.constant 0 : i32
    %c0_i32_1 = arith.constant 0 : i32
    return %c0_i32, %c0_i32_0 : i32, i32
  }
  func.func @transform_7(%arg0: i32) -> (i32, i32) {
    %c0_i32 = arith.constant 0 : i32
    %c0_i32_0 = arith.constant 0 : i32
    return %arg0, %c0_i32 : i32, i32
  }
  func.func @transform_8(%arg0: i32) -> (i32, i32) {
    %c0_i32 = arith.constant 0 : i32
    %c0_i32_0 = arith.constant 0 : i32
    return %arg0, %c0_i32 : i32, i32
  }
  func.func @transform_9(%arg0: i32) -> (i32, i32) {
    %c0_i32 = arith.constant 0 : i32
    %c0_i32_0 = arith.constant 0 : i32
    return %arg0, %c0_i32 : i32, i32
  }
}

</mosaic_0001>

<llo_original>
// kernel: tpu_custom_call.1
$region0: #{tpu_custom_call.1}
  #allocation0 [shape = 'u32[]', space=smem, size = 0x4, offset = 0x4, fixed_abs, tag = 'smem constant byte address 0x4 - core index']
  #allocation1 [shape = 'u32[144,128]{1,0:T(1,128)}', space=vmem, size = 0x12000, scoped, tag = 'internal scratch']
  %s0 = inlined_call_operand.vmem [shape: f32[512,32], index: 0, kind: input, shape index: {}]
  %s1 = inlined_call_operand.vmem [shape: f32[512,16], index: 1, kind: input, shape index: {}]
  %s2 = inlined_call_operand.vmem [shape: f32[32,16], index: 2, kind: input, shape index: {}]
  %s3 = inlined_call_operand.vmem [shape: f32[1,16], index: 3, kind: input, shape index: {}]
  %s4 = inlined_call_operand.vmem [shape: f32[16,16], index: 4, kind: input, shape index: {}]
  %s5 = inlined_call_operand.vmem [shape: f32[16,16], index: 5, kind: input, shape index: {}]
  %s6 = inlined_call_operand.vmem [shape: f32[16,16], index: 6, kind: input, shape index: {}]
  %s7 = inlined_call_operand.vmem [shape: f32[512,16], index: 7, kind: output, shape index: {0}]
  %s8 = inlined_call_operand.vmem [shape: f32[512,16], index: 8, kind: output, shape index: {1}]
  %s9 = inlined_call_operand.vmem [shape: f32[512,16], index: 9, kind: output, shape index: {2}]
  %10 = xla_tuple %s7, %s8, %s9
  %s11 = sld [smem:[#allocation0]]
  $region54: #{tpu_custom_call.1} parent=0
    _
  %s13 = ssub.s32 1, %s11
  %s14 = scalar_select 0, %s13, %s11
  // Predicated region
  $region2: #{tpu_custom_call.1} parent=0 // pred_check
    _
  $region3: #{tpu_custom_call.1} parent=0 // pred_check_branch
    %16 = sbr.rel (0) target = $region5
  $region4: #{tpu_custom_call.1} parent=0 // pred_region
    _
  $region5: #{tpu_custom_call.1} parent=0 // pred_fallthru
    _
  // Predicated region
  $region6: #{tpu_custom_call.1} parent=0 // pred_check
    _
  $region7: #{tpu_custom_call.1} parent=0 // pred_check_branch
    %18 = sbr.rel (0) target = $region9
  $region8: #{tpu_custom_call.1} parent=0 // pred_region
    _
  $region9: #{tpu_custom_call.1} parent=0 // pred_fallthru
    _
  // Predicated region
  $region10: #{tpu_custom_call.1} parent=0 // pred_check
    _
  $region11: #{tpu_custom_call.1} parent=0 // pred_check_branch
    %20 = sbr.rel (0) target = $region13
  $region12: #{tpu_custom_call.1} parent=0 // pred_region
    _
  $region13: #{tpu_custom_call.1} parent=0 // pred_fallthru
    _
  // Predicated region
  $region14: #{tpu_custom_call.1} parent=0 // pred_check
    _
  $region15: #{tpu_custom_call.1} parent=0 // pred_check_branch
    %22 = sbr.rel (0) target = $region17
  $region16: #{tpu_custom_call.1} parent=0 // pred_region
    _
  $region17: #{tpu_custom_call.1} parent=0 // pred_fallthru
    _
  // Predicated region
  $region18: #{tpu_custom_call.1} parent=0 // pred_check
    _
  $region19: #{tpu_custom_call.1} parent=0 // pred_check_branch
    %24 = sbr.rel (0) target = $region21
  $region20: #{tpu_custom_call.1} parent=0 // pred_region
    _
  $region21: #{tpu_custom_call.1} parent=0 // pred_fallthru
    _
  // Predicated region
  $region22: #{tpu_custom_call.1} parent=0 // pred_check
    _
  $region23: #{tpu_custom_call.1} parent=0 // pred_check_branch
    %26 = sbr.rel (0) target = $region25
  $region24: #{tpu_custom_call.1} parent=0 // pred_region
    _
  $region25: #{tpu_custom_call.1} parent=0 // pred_fallthru
    _
  // Predicated region
  $region26: #{tpu_custom_call.1} parent=0 // pred_check
    _
  $region27: #{tpu_custom_call.1} parent=0 // pred_check_branch
    %28 = sbr.rel (0) target = $region29
  $region28: #{tpu_custom_call.1} parent=0 // pred_region
    _
  $region29: #{tpu_custom_call.1} parent=0 // pred_fallthru
    _
  %v29 = vld [vmem:[%s0] sm:$0xff]
  %v30 = vld [vmem:[%s0 + $0x8] sm:$0xff]
  %v31 = vld [vmem:[%s0 + $0x10] sm:$0xff]
  %v32 = vld [vmem:[%s0 + $0x18] sm:$0xff]
  %v33 = vld [vmem:[%s0 + $0x20] sm:$0xff]
  %v34 = vld [vmem:[%s0 + $0x28] sm:$0xff]
  %v35 = vld [vmem:[%s0 + $0x30] sm:$0xff]
  %v36 = vld [vmem:[%s0 + $0x38] sm:$0xff]
  %v37 = vld [vmem:[%s0 + $0x40] sm:$0xff]
  %v38 = vld [vmem:[%s0 + $0x48] sm:$0xff]
  %v39 = vld [vmem:[%s0 + $0x50] sm:$0xff]
  %v40 = vld [vmem:[%s0 + $0x58] sm:$0xff]
  %v41 = vld [vmem:[%s0 + $0x60] sm:$0xff]
  %v42 = vld [vmem:[%s0 + $0x68] sm:$0xff]
  %v43 = vld [vmem:[%s0 + $0x70] sm:$0xff]
  %v44 = vld [vmem:[%s0 + $0x78] sm:$0xff]
  %v45 = vld [vmem:[%s0 + $0x80] sm:$0xff]
  %v46 = vld [vmem:[%s0 + $0x88] sm:$0xff]
  %v47 = vld [vmem:[%s0 + $0x90] sm:$0xff]
  %v48 = vld [vmem:[%s0 + $0x98] sm:$0xff]
  %v49 = vld [vmem:[%s0 + $0xa0] sm:$0xff]
  %v50 = vld [vmem:[%s0 + $0xa8] sm:$0xff]
  %v51 = vld [vmem:[%s0 + $0xb0] sm:$0xff]
  %v52 = vld [vmem:[%s0 + $0xb8] sm:$0xff]
  %v53 = vld [vmem:[%s0 + $0xc0] sm:$0xff]
  %v54 = vld [vmem:[%s0 + $0xc8] sm:$0xff]
  %v55 = vld [vmem:[%s0 + $0xd0] sm:$0xff]
  %v56 = vld [vmem:[%s0 + $0xd8] sm:$0xff]
  %v57 = vld [vmem:[%s0 + $0xe0] sm:$0xff]
  %v58 = vld [vmem:[%s0 + $0xe8] sm:$0xff]
  %v59 = vld [vmem:[%s0 + $0xf0] sm:$0xff]
  %v60 = vld [vmem:[%s0 + $0xf8] sm:$0xff]
  %v61 = vld [vmem:[%s0 + $0x100] sm:$0xff]
  %v62 = vld [vmem:[%s0 + $0x108] sm:$0xff]
  %v63 = vld [vmem:[%s0 + $0x110] sm:$0xff]
  %v64 = vld [vmem:[%s0 + $0x118] sm:$0xff]
  %v65 = vld [vmem:[%s0 + $0x120] sm:$0xff]
  %v66 = vld [vmem:[%s0 + $0x128] sm:$0xff]
  %v67 = vld [vmem:[%s0 + $0x130] sm:$0xff]
  %v68 = vld [vmem:[%s0 + $0x138] sm:$0xff]
  %v69 = vld [vmem:[%s0 + $0x140] sm:$0xff]
  %v70 = vld [vmem:[%s0 + $0x148] sm:$0xff]
  %v71 = vld [vmem:[%s0 + $0x150] sm:$0xff]
  %v72 = vld [vmem:[%s0 + $0x158] sm:$0xff]
  %v73 = vld [vmem:[%s0 + $0x160] sm:$0xff]
  %v74 = vld [vmem:[%s0 + $0x168] sm:$0xff]
  %v75 = vld [vmem:[%s0 + $0x170] sm:$0xff]
  %v76 = vld [vmem:[%s0 + $0x178] sm:$0xff]
  %v77 = vld [vmem:[%s0 + $0x180] sm:$0xff]
  %v78 = vld [vmem:[%s0 + $0x188] sm:$0xff]
  %v79 = vld [vmem:[%s0 + $0x190] sm:$0xff]
  %v80 = vld [vmem:[%s0 + $0x198] sm:$0xff]
  %v81 = vld [vmem:[%s0 + $0x1a0] sm:$0xff]
  %v82 = vld [vmem:[%s0 + $0x1a8] sm:$0xff]
  %v83 = vld [vmem:[%s0 + $0x1b0] sm:$0xff]
  %v84 = vld [vmem:[%s0 + $0x1b8] sm:$0xff]
  %v85 = vld [vmem:[%s0 + $0x1c0] sm:$0xff]
  %v86 = vld [vmem:[%s0 + $0x1c8] sm:$0xff]
  %v87 = vld [vmem:[%s0 + $0x1d0] sm:$0xff]
  %v88 = vld [vmem:[%s0 + $0x1d8] sm:$0xff]
  %v89 = vld [vmem:[%s0 + $0x1e0] sm:$0xff]
  %v90 = vld [vmem:[%s0 + $0x1e8] sm:$0xff]
  %v91 = vld [vmem:[%s0 + $0x1f0] sm:$0xff]
  %v92 = vld [vmem:[%s0 + $0x1f8] sm:$0xff]
  %v93 = vld [vmem:[%s2] sm:$0xff]
  %v94 = vld [vmem:[%s2 + $0x8] sm:$0xff]
  %v95 = vld [vmem:[%s2 + $0x10] sm:$0xff]
  %v96 = vld [vmem:[%s2 + $0x18] sm:$0xff]
  %v97 = vld [vmem:[%s3] sm:$0x1]
  %v99 = vlaneseq
  %v100 = vshrl.u32 %v99, 7
  %v101 = vsub.s32 0, %v100
  %v102 = vrot.slane %v97, %v101
  %vm104 = vcmask 261120
  %v106 = vsel %vm104, %v29, 0
  %v109 = vsel %vm104, %v30, 0
  %v112 = vsel %vm104, %v31, 0
  %v115 = vsel %vm104, %v32, 0
  %v118 = vsel %vm104, %v33, 0
  %v121 = vsel %vm104, %v34, 0
  %v124 = vsel %vm104, %v35, 0
  %v127 = vsel %vm104, %v36, 0
  %v130 = vsel %vm104, %v37, 0
  %v133 = vsel %vm104, %v38, 0
  %v136 = vsel %vm104, %v39, 0
  %v139 = vsel %vm104, %v40, 0
  %v142 = vsel %vm104, %v41, 0
  %v145 = vsel %vm104, %v42, 0
  %v148 = vsel %vm104, %v43, 0
  %v151 = vsel %vm104, %v44, 0
  %v154 = vsel %vm104, %v45, 0
  %v157 = vsel %vm104, %v46, 0
  %v160 = vsel %vm104, %v47, 0
  %v163 = vsel %vm104, %v48, 0
  %v166 = vsel %vm104, %v49, 0
  %v169 = vsel %vm104, %v50, 0
  %v172 = vsel %vm104, %v51, 0
  %v175 = vsel %vm104, %v52, 0
  %v178 = vsel %vm104, %v53, 0
  %v181 = vsel %vm104, %v54, 0
  %v184 = vsel %vm104, %v55, 0
  %v187 = vsel %vm104, %v56, 0
  %v190 = vsel %vm104, %v57, 0
  %v193 = vsel %vm104, %v58, 0
  %v196 = vsel %vm104, %v59, 0
  %v199 = vsel %vm104, %v60, 0
  %v202 = vsel %vm104, %v61, 0
  %v205 = vsel %vm104, %v62, 0
  %v208 = vsel %vm104, %v63, 0
  %v211 = vsel %vm104, %v64, 0
  %v214 = vsel %vm104, %v65, 0
  %v217 = vsel %vm104, %v66, 0
  %v220 = vsel %vm104, %v67, 0
  %v223 = vsel %vm104, %v68, 0
  %v226 = vsel %vm104, %v69, 0
  %v229 = vsel %vm104, %v70, 0
  %v232 = vsel %vm104, %v71, 0
  %v235 = vsel %vm104, %v72, 0
  %v238 = vsel %vm104, %v73, 0
  %v241 = vsel %vm104, %v74, 0
  %v244 = vsel %vm104, %v75, 0
  %v247 = vsel %vm104, %v76, 0
  %v250 = vsel %vm104, %v77, 0
  %v253 = vsel %vm104, %v78, 0
  %v256 = vsel %vm104, %v79, 0
  %v259 = vsel %vm104, %v80, 0
  %v262 = vsel %vm104, %v81, 0
  %v265 = vsel %vm104, %v82, 0
  %v268 = vsel %vm104, %v83, 0
  %v271 = vsel %vm104, %v84, 0
  %v274 = vsel %vm104, %v85, 0
  %v277 = vsel %vm104, %v86, 0
  %v280 = vsel %vm104, %v87, 0
  %v283 = vsel %vm104, %v88, 0
  %v286 = vsel %vm104, %v89, 0
  %v289 = vsel %vm104, %v90, 0
  %v292 = vsel %vm104, %v91, 0
  %v295 = vsel %vm104, %v92, 0
  %297 = vmatprep.subr.mxu0 0.0
  %298 = vmatpush1.msra.mxu0 %v93
  %299 = vmatprep.subr.mxu0 0.0
  %300 = vmatpush1.msra.mxu0 %v94
  %301 = vmatprep.subr.mxu0 0.0
  %302 = vmatpush1.msra.mxu0 %v95
  %303 = vmatprep.subr.mxu0 0.0
  %304 = vmatpush1.msra.mxu0 %v96
  %305 = vmatprep.subr.mxu0 0.0
  %306 = vmatpush1.msra.mxu0 0.0
  %307 = vmatprep.subr.mxu0 0.0
  %308 = vmatpush1.msra.mxu0 0.0
  %309 = vmatprep.subr.mxu0 0.0
  %310 = vmatpush1.msra.mxu0 0.0
  %311 = vmatprep.subr.mxu0 0.0
  %312 = vmatpush1.msra.mxu0 0.0
  %313 = vmatprep.subr.mxu0 0.0
  %314 = vmatpush1.msra.mxu0 0.0
  %315 = vmatprep.subr.mxu0 0.0
  %316 = vmatpush1.msra.mxu0 0.0
  %317 = vmatprep.subr.mxu0 0.0
  %318 = vmatpush1.msra.mxu0 0.0
  %319 = vmatprep.subr.mxu0 0.0
  %320 = vmatpush1.msra.mxu0 0.0
  %321 = vmatprep.subr.mxu0 0.0
  %322 = vmatpush1.msra.mxu0 0.0
  %323 = vmatprep.subr.mxu0 0.0
  %324 = vmatpush1.msra.mxu0 0.0
  %325 = vmatprep.subr.mxu0 0.0
  %326 = vmatpush1.msra.mxu0 0.0
  %327 = vmatprep.subr.mxu0 0.0
  %328 = vmatpush1.msra.mxu0 0.0
  %329 = vmatprep.subr.mxu0 0.0
  %330 = vmatpush1.msra.mxu0 0.0
  %331 = vmatprep.subr.mxu0 0.0
  %332 = vmatpush1.msra.mxu0 0.0
  %333 = vmatprep.subr.mxu0 0.0
  %334 = vmatpush1.msra.mxu0 0.0
  %335 = vmatprep.subr.mxu0 0.0
  %336 = vmatpush1.msra.mxu0 0.0
  %337 = vmatprep.subr.mxu0 0.0
  %338 = vmatpush1.msra.mxu0 0.0
  %339 = vmatprep.subr.mxu0 0.0
  %340 = vmatpush1.msra.mxu0 0.0
  %341 = vmatprep.subr.mxu0 0.0
  %342 = vmatpush1.msra.mxu0 0.0
  %343 = vmatprep.subr.mxu0 0.0
  %344 = vmatpush1.msra.mxu0 0.0
  %345 = vmatprep.subr.mxu0 0.0
  %346 = vmatpush1.msra.mxu0 0.0
  %347 = vmatprep.subr.mxu0 0.0
  %348 = vmatpush1.msra.mxu0 0.0
  %349 = vmatprep.subr.mxu0 0.0
  %350 = vmatpush1.msra.mxu0 0.0
  %351 = vmatprep.subr.mxu0 0.0
  %352 = vmatpush1.msra.mxu0 0.0
  %353 = vmatprep.subr.mxu0 0.0
  %354 = vmatpush1.msra.mxu0 0.0
  %355 = vmatprep.subr.mxu0 0.0
  %356 = vmatpush1.msra.mxu0 0.0
  %357 = vmatprep.subr.mxu0 0.0
  %358 = vmatpush1.msra.mxu0 0.0
  %359 = vmatprep.subr.mxu0 0.0
  %360 = vmatpush1.msra.mxu0 0.0
  %361 = vmatprep.mubr.f32.mxu0 0.0
  %362 = vmatmul.mubr.f32.gmra.mrb[0].mxu0 %v106
  %v363 = vpop.f32.mrb[0].mxu0
  %v364 = vadd.f32 %v102, %v363
  %v365 = vpop.f32.mrb[0].mxu0
  %366 = vmatprep.mubr.f32.mxu0 0.0
  %367 = vmatmul.mubr.f32.gmra.mrb[0].mxu0 %v109
  %v368 = vpop.f32.mrb[0].mxu0
  %v369 = vadd.f32 %v102, %v368
  %v370 = vpop.f32.mrb[0].mxu0
  %371 = vmatprep.mubr.f32.mxu0 0.0
  %372 = vmatmul.mubr.f32.gmra.mrb[0].mxu0 %v112
  %v373 = vpop.f32.mrb[0].mxu0
  %v374 = vadd.f32 %v102, %v373
  %v375 = vpop.f32.mrb[0].mxu0
  %376 = vmatprep.mubr.f32.mxu0 0.0
  %377 = vmatmul.mubr.f32.gmra.mrb[0].mxu0 %v115
  %v378 = vpop.f32.mrb[0].mxu0
  %v379 = vadd.f32 %v102, %v378
  %v380 = vpop.f32.mrb[0].mxu0
  %381 = vmatprep.mubr.f32.mxu0 0.0
  %382 = vmatmul.mubr.f32.gmra.mrb[0].mxu0 %v118
  %v383 = vpop.f32.mrb[0].mxu0
  %v384 = vadd.f32 %v102, %v383
  %v385 = vpop.f32.mrb[0].mxu0
  %386 = vmatprep.mubr.f32.mxu0 0.0
  %387 = vmatmul.mubr.f32.gmra.mrb[0].mxu0 %v121
  %v388 = vpop.f32.mrb[0].mxu0
  %v389 = vadd.f32 %v102, %v388
  %v390 = vpop.f32.mrb[0].mxu0
  %391 = vmatprep.mubr.f32.mxu0 0.0
  %392 = vmatmul.mubr.f32.gmra.mrb[0].mxu0 %v124
  %v393 = vpop.f32.mrb[0].mxu0
  %v394 = vadd.f32 %v102, %v393
  %v395 = vpop.f32.mrb[0].mxu0
  %396 = vmatprep.mubr.f32.mxu0 0.0
  %397 = vmatmul.mubr.f32.gmra.mrb[0].mxu0 %v127
  %v398 = vpop.f32.mrb[0].mxu0
  %v399 = vadd.f32 %v102, %v398
  %v400 = vpop.f32.mrb[0].mxu0
  %401 = vmatprep.mubr.f32.mxu0 0.0
  %402 = vmatmul.mubr.f32.gmra.mrb[0].mxu0 %v130
  %v403 = vpop.f32.mrb[0].mxu0
  %v404 = vadd.f32 %v102, %v403
  %v405 = vpop.f32.mrb[0].mxu0
  %406 = vmatprep.mubr.f32.mxu0 0.0
  %407 = vmatmul.mubr.f32.gmra.mrb[0].mxu0 %v133
  %v408 = vpop.f32.mrb[0].mxu0
  %v409 = vadd.f32 %v102, %v408
  %v410 = vpop.f32.mrb[0].mxu0
  %411 = vmatprep.mubr.f32.mxu0 0.0
  %412 = vmatmul.mubr.f32.gmra.mrb[0].mxu0 %v136
  %v413 = vpop.f32.mrb[0].mxu0
  %v414 = vadd.f32 %v102, %v413
  %v415 = vpop.f32.mrb[0].mxu0
  %416 = vmatprep.mubr.f32.mxu0 0.0
  %417 = vmatmul.mubr.f32.gmra.mrb[0].mxu0 %v139
  %v418 = vpop.f32.mrb[0].mxu0
  %v419 = vadd.f32 %v102, %v418
  %v420 = vpop.f32.mrb[0].mxu0
  %421 = vmatprep.mubr.f32.mxu0 0.0
  %422 = vmatmul.mubr.f32.gmra.mrb[0].mxu0 %v142
  %v423 = vpop.f32.mrb[0].mxu0
  %v424 = vadd.f32 %v102, %v423
  %v425 = vpop.f32.mrb[0].mxu0
  %426 = vmatprep.mubr.f32.mxu0 0.0
  %427 = vmatmul.mubr.f32.gmra.mrb[0].mxu0 %v145
  %v428 = vpop.f32.mrb[0].mxu0
  %v429 = vadd.f32 %v102, %v428
  %v430 = vpop.f32.mrb[0].mxu0
  %431 = vmatprep.mubr.f32.mxu0 0.0
  %432 = vmatmul.mubr.f32.gmra.mrb[0].mxu0 %v148
  %v433 = vpop.f32.mrb[0].mxu0
  %v434 = vadd.f32 %v102, %v433
  %v435 = vpop.f32.mrb[0].mxu0
  %436 = vmatprep.mubr.f32.mxu0 0.0
  %437 = vmatmul.mubr.f32.gmra.mrb[0].mxu0 %v151
  %v438 = vpop.f32.mrb[0].mxu0
  %v439 = vadd.f32 %v102, %v438
  %v440 = vpop.f32.mrb[0].mxu0
  %441 = vmatprep.mubr.f32.mxu0 0.0
  %442 = vmatmul.mubr.f32.gmra.mrb[0].mxu0 %v154
  %v443 = vpop.f32.mrb[0].mxu0
  %v444 = vadd.f32 %v102, %v443
  %v445 = vpop.f32.mrb[0].mxu0
  %446 = vmatprep.mubr.f32.mxu0 0.0
  %447 = vmatmul.mubr.f32.gmra.mrb[0].mxu0 %v157
  %v448 = vpop.f32.mrb[0].mxu0
  %v449 = vadd.f32 %v102, %v448
  %v450 = vpop.f32.mrb[0].mxu0
  %451 = vmatprep.mubr.f32.mxu0 0.0
  %452 = vmatmul.mubr.f32.gmra.mrb[0].mxu0 %v160
  %v453 = vpop.f32.mrb[0].mxu0
  %v454 = vadd.f32 %v102, %v453
  %v455 = vpop.f32.mrb[0].mxu0
  %456 = vmatprep.mubr.f32.mxu0 0.0
  %457 = vmatmul.mubr.f32.gmra.mrb[0].mxu0 %v163
  %v458 = vpop.f32.mrb[0].mxu0
  %v459 = vadd.f32 %v102, %v458
  %v460 = vpop.f32.mrb[0].mxu0
  %461 = vmatprep.mubr.f32.mxu0 0.0
  %462 = vmatmul.mubr.f32.gmra.mrb[0].mxu0 %v166
  %v463 = vpop.f32.mrb[0].mxu0
  %v464 = vadd.f32 %v102, %v463
  %v465 = vpop.f32.mrb[0].mxu0
  %466 = vmatprep.mubr.f32.mxu0 0.0
  %467 = vmatmul.mubr.f32.gmra.mrb[0].mxu0 %v169
  %v468 = vpop.f32.mrb[0].mxu0
  %v469 = vadd.f32 %v102, %v468
  %v470 = vpop.f32.mrb[0].mxu0
  %471 = vmatprep.mubr.f32.mxu0 0.0
  %472 = vmatmul.mubr.f32.gmra.mrb[0].mxu0 %v172
  %v473 = vpop.f32.mrb[0].mxu0
  %v474 = vadd.f32 %v102, %v473
  %v475 = vpop.f32.mrb[0].mxu0
  %476 = vmatprep.mubr.f32.mxu0 0.0
  %477 = vmatmul.mubr.f32.gmra.mrb[0].mxu0 %v175
  %v478 = vpop.f32.mrb[0].mxu0
  %v479 = vadd.f32 %v102, %v478
  %v480 = vpop.f32.mrb[0].mxu0
  %481 = vmatprep.mubr.f32.mxu0 0.0
  %482 = vmatmul.mubr.f32.gmra.mrb[0].mxu0 %v178
  %v483 = vpop.f32.mrb[0].mxu0
  %v484 = vadd.f32 %v102, %v483
  %v485 = vpop.f32.mrb[0].mxu0
  %486 = vmatprep.mubr.f32.mxu0 0.0
  %487 = vmatmul.mubr.f32.gmra.mrb[0].mxu0 %v181
  %v488 = vpop.f32.mrb[0].mxu0
  %v489 = vadd.f32 %v102, %v488
  %v490 = vpop.f32.mrb[0].mxu0
  %491 = vmatprep.mubr.f32.mxu0 0.0
  %492 = vmatmul.mubr.f32.gmra.mrb[0].mxu0 %v184
  %v493 = vpop.f32.mrb[0].mxu0
  %v494 = vadd.f32 %v102, %v493
  %v495 = vpop.f32.mrb[0].mxu0
  %496 = vmatprep.mubr.f32.mxu0 0.0
  %497 = vmatmul.mubr.f32.gmra.mrb[0].mxu0 %v187
  %v498 = vpop.f32.mrb[0].mxu0
  %v499 = vadd.f32 %v102, %v498
  %v500 = vpop.f32.mrb[0].mxu0
  %501 = vmatprep.mubr.f32.mxu0 0.0
  %502 = vmatmul.mubr.f32.gmra.mrb[0].mxu0 %v190
  %v503 = vpop.f32.mrb[0].mxu0
  %v504 = vadd.f32 %v102, %v503
  %v505 = vpop.f32.mrb[0].mxu0
  %506 = vmatprep.mubr.f32.mxu0 0.0
  %507 = vmatmul.mubr.f32.gmra.mrb[0].mxu0 %v193
  %v508 = vpop.f32.mrb[0].mxu0
  %v509 = vadd.f32 %v102, %v508
  %v510 = vpop.f32.mrb[0].mxu0
  %511 = vmatprep.mubr.f32.mxu0 0.0
  %512 = vmatmul.mubr.f32.gmra.mrb[0].mxu0 %v196
  %v513 = vpop.f32.mrb[0].mxu0
  %v514 = vadd.f32 %v102, %v513
  %v515 = vpop.f32.mrb[0].mxu0
  %516 = vmatprep.mubr.f32.mxu0 0.0
  %517 = vmatmul.mubr.f32.gmra.mrb[0].mxu0 %v199
  %v518 = vpop.f32.mrb[0].mxu0
  %v519 = vadd.f32 %v102, %v518
  %v520 = vpop.f32.mrb[0].mxu0
  %521 = vmatprep.mubr.f32.mxu0 0.0
  %522 = vmatmul.mubr.f32.gmra.mrb[0].mxu0 %v202
  %v523 = vpop.f32.mrb[0].mxu0
  %v524 = vadd.f32 %v102, %v523
  %v525 = vpop.f32.mrb[0].mxu0
  %526 = vmatprep.mubr.f32.mxu0 0.0
  %527 = vmatmul.mubr.f32.gmra.mrb[0].mxu0 %v205
  %v528 = vpop.f32.mrb[0].mxu0
  %v529 = vadd.f32 %v102, %v528
  %v530 = vpop.f32.mrb[0].mxu0
  %531 = vmatprep.mubr.f32.mxu0 0.0
  %532 = vmatmul.mubr.f32.gmra.mrb[0].mxu0 %v208
  %v533 = vpop.f32.mrb[0].mxu0
  %v534 = vadd.f32 %v102, %v533
  %v535 = vpop.f32.mrb[0].mxu0
  %536 = vmatprep.mubr.f32.mxu0 0.0
  %537 = vmatmul.mubr.f32.gmra.mrb[0].mxu0 %v211
  %v538 = vpop.f32.mrb[0].mxu0
  %v539 = vadd.f32 %v102, %v538
  %v540 = vpop.f32.mrb[0].mxu0
  %541 = vmatprep.mubr.f32.mxu0 0.0
  %542 = vmatmul.mubr.f32.gmra.mrb[0].mxu0 %v214
  %v543 = vpop.f32.mrb[0].mxu0
  %v544 = vadd.f32 %v102, %v543
  %v545 = vpop.f32.mrb[0].mxu0
  %546 = vmatprep.mubr.f32.mxu0 0.0
  %547 = vmatmul.mubr.f32.gmra.mrb[0].mxu0 %v217
  %v548 = vpop.f32.mrb[0].mxu0
  %v549 = vadd.f32 %v102, %v548
  %v550 = vpop.f32.mrb[0].mxu0
  %551 = vmatprep.mubr.f32.mxu0 0.0
  %552 = vmatmul.mubr.f32.gmra.mrb[0].mxu0 %v220
  %v553 = vpop.f32.mrb[0].mxu0
  %v554 = vadd.f32 %v102, %v553
  %v555 = vpop.f32.mrb[0].mxu0
  %556 = vmatprep.mubr.f32.mxu0 0.0
  %557 = vmatmul.mubr.f32.gmra.mrb[0].mxu0 %v223
  %v558 = vpop.f32.mrb[0].mxu0
  %v559 = vadd.f32 %v102, %v558
  %v560 = vpop.f32.mrb[0].mxu0
  %561 = vmatprep.mubr.f32.mxu0 0.0
  %562 = vmatmul.mubr.f32.gmra.mrb[0].mxu0 %v226
  %v563 = vpop.f32.mrb[0].mxu0
  %v564 = vadd.f32 %v102, %v563
  %v565 = vpop.f32.mrb[0].mxu0
  %566 = vmatprep.mubr.f32.mxu0 0.0
  %567 = vmatmul.mubr.f32.gmra.mrb[0].mxu0 %v229
  %v568 = vpop.f32.mrb[0].mxu0
  %v569 = vadd.f32 %v102, %v568
  %v570 = vpop.f32.mrb[0].mxu0
  %571 = vmatprep.mubr.f32.mxu0 0.0
  %572 = vmatmul.mubr.f32.gmra.mrb[0].mxu0 %v232
  %v573 = vpop.f32.mrb[0].mxu0
  %v574 = vadd.f32 %v102, %v573
  %v575 = vpop.f32.mrb[0].mxu0
  %576 = vmatprep.mubr.f32.mxu0 0.0
  %577 = vmatmul.mubr.f32.gmra.mrb[0].mxu0 %v235
  %v578 = vpop.f32.mrb[0].mxu0
  %v579 = vadd.f32 %v102, %v578
  %v580 = vpop.f32.mrb[0].mxu0
  %581 = vmatprep.mubr.f32.mxu0 0.0
  %582 = vmatmul.mubr.f32.gmra.mrb[0].mxu0 %v238
  %v583 = vpop.f32.mrb[0].mxu0
  %v584 = vadd.f32 %v102, %v583
  %v585 = vpop.f32.mrb[0].mxu0
  %586 = vmatprep.mubr.f32.mxu0 0.0
  %587 = vmatmul.mubr.f32.gmra.mrb[0].mxu0 %v241
  %v588 = vpop.f32.mrb[0].mxu0
  %v589 = vadd.f32 %v102, %v588
  %v590 = vpop.f32.mrb[0].mxu0
  %591 = vmatprep.mubr.f32.mxu0 0.0
  %592 = vmatmul.mubr.f32.gmra.mrb[0].mxu0 %v244
  %v593 = vpop.f32.mrb[0].mxu0
  %v594 = vadd.f32 %v102, %v593
  %v595 = vpop.f32.mrb[0].mxu0
  %596 = vmatprep.mubr.f32.mxu0 0.0
  %597 = vmatmul.mubr.f32.gmra.mrb[0].mxu0 %v247
  %v598 = vpop.f32.mrb[0].mxu0
  %v599 = vadd.f32 %v102, %v598
  %v600 = vpop.f32.mrb[0].mxu0
  %601 = vmatprep.mubr.f32.mxu0 0.0
  %602 = vmatmul.mubr.f32.gmra.mrb[0].mxu0 %v250
  %v603 = vpop.f32.mrb[0].mxu0
  %v604 = vadd.f32 %v102, %v603
  %v605 = vpop.f32.mrb[0].mxu0
  %606 = vmatprep.mubr.f32.mxu0 0.0
  %607 = vmatmul.mubr.f32.gmra.mrb[0].mxu0 %v253
  %v608 = vpop.f32.mrb[0].mxu0
  %v609 = vadd.f32 %v102, %v608
  %v610 = vpop.f32.mrb[0].mxu0
  %611 = vmatprep.mubr.f32.mxu0 0.0
  %612 = vmatmul.mubr.f32.gmra.mrb[0].mxu0 %v256
  %v613 = vpop.f32.mrb[0].mxu0
  %v614 = vadd.f32 %v102, %v613
  %v615 = vpop.f32.mrb[0].mxu0
  %616 = vmatprep.mubr.f32.mxu0 0.0
  %617 = vmatmul.mubr.f32.gmra.mrb[0].mxu0 %v259
  %v618 = vpop.f32.mrb[0].mxu0
  %v619 = vadd.f32 %v102, %v618
  %v620 = vpop.f32.mrb[0].mxu0
  %621 = vmatprep.mubr.f32.mxu0 0.0
  %622 = vmatmul.mubr.f32.gmra.mrb[0].mxu0 %v262
  %v623 = vpop.f32.mrb[0].mxu0
  %v624 = vadd.f32 %v102, %v623
  %v625 = vpop.f32.mrb[0].mxu0
  %626 = vmatprep.mubr.f32.mxu0 0.0
  %627 = vmatmul.mubr.f32.gmra.mrb[0].mxu0 %v265
  %v628 = vpop.f32.mrb[0].mxu0
  %v629 = vadd.f32 %v102, %v628
  %v630 = vpop.f32.mrb[0].mxu0
  %631 = vmatprep.mubr.f32.mxu0 0.0
  %632 = vmatmul.mubr.f32.gmra.mrb[0].mxu0 %v268
  %v633 = vpop.f32.mrb[0].mxu0
  %v634 = vadd.f32 %v102, %v633
  %v635 = vpop.f32.mrb[0].mxu0
  %636 = vmatprep.mubr.f32.mxu0 0.0
  %637 = vmatmul.mubr.f32.gmra.mrb[0].mxu0 %v271
  %v638 = vpop.f32.mrb[0].mxu0
  %v639 = vadd.f32 %v102, %v638
  %v640 = vpop.f32.mrb[0].mxu0
  %641 = vmatprep.mubr.f32.mxu0 0.0
  %642 = vmatmul.mubr.f32.gmra.mrb[0].mxu0 %v274
  %v643 = vpop.f32.mrb[0].mxu0
  %v644 = vadd.f32 %v102, %v643
  %v645 = vpop.f32.mrb[0].mxu0
  %646 = vmatprep.mubr.f32.mxu0 0.0
  %647 = vmatmul.mubr.f32.gmra.mrb[0].mxu0 %v277
  %v648 = vpop.f32.mrb[0].mxu0
  %v649 = vadd.f32 %v102, %v648
  %v650 = vpop.f32.mrb[0].mxu0
  %651 = vmatprep.mubr.f32.mxu0 0.0
  %652 = vmatmul.mubr.f32.gmra.mrb[0].mxu0 %v280
  %v653 = vpop.f32.mrb[0].mxu0
  %v654 = vadd.f32 %v102, %v653
  %v655 = vpop.f32.mrb[0].mxu0
  %656 = vmatprep.mubr.f32.mxu0 0.0
  %657 = vmatmul.mubr.f32.gmra.mrb[0].mxu0 %v283
  %v658 = vpop.f32.mrb[0].mxu0
  %v659 = vadd.f32 %v102, %v658
  %v660 = vpop.f32.mrb[0].mxu0
  %661 = vmatprep.mubr.f32.mxu0 0.0
  %662 = vmatmul.mubr.f32.gmra.mrb[0].mxu0 %v286
  %v663 = vpop.f32.mrb[0].mxu0
  %v664 = vadd.f32 %v102, %v663
  %v665 = vpop.f32.mrb[0].mxu0
  %666 = vmatprep.mubr.f32.mxu0 0.0
  %667 = vmatmul.mubr.f32.gmra.mrb[0].mxu0 %v289
  %v668 = vpop.f32.mrb[0].mxu0
  %v669 = vadd.f32 %v102, %v668
  %v670 = vpop.f32.mrb[0].mxu0
  %671 = vmatprep.mubr.f32.mxu0 0.0
  %672 = vmatmul.mubr.f32.gmra.mrb[0].mxu0 %v292
  %v673 = vpop.f32.mrb[0].mxu0
  %v674 = vadd.f32 %v102, %v673
  %v675 = vpop.f32.mrb[0].mxu0
  %676 = vmatprep.mubr.f32.mxu0 0.0
  %677 = vmatmul.mubr.f32.gmra.mrb[0].mxu0 %v295
  %v678 = vpop.f32.mrb[0].mxu0
  %v679 = vadd.f32 %v102, %v678
  %v680 = vpop.f32.mrb[0].mxu0
  %681 = vdwg.mxu0
  %v682 = vmax.f32 %v364, 0.0
  %v683 = vmax.f32 %v369, 0.0
  %v684 = vmax.f32 %v374, 0.0
  %v685 = vmax.f32 %v379, 0.0
  %v686 = vmax.f32 %v384, 0.0
  %v687 = vmax.f32 %v389, 0.0
  %v688 = vmax.f32 %v394, 0.0
  %v689 = vmax.f32 %v399, 0.0
  %v690 = vmax.f32 %v404, 0.0
  %v691 = vmax.f32 %v409, 0.0
  %v692 = vmax.f32 %v414, 0.0
  %v693 = vmax.f32 %v419, 0.0
  %v694 = vmax.f32 %v424, 0.0
  %v695 = vmax.f32 %v429, 0.0
  %v696 = vmax.f32 %v434, 0.0
  %v697 = vmax.f32 %v439, 0.0
  %v698 = vmax.f32 %v444, 0.0
  %v699 = vmax.f32 %v449, 0.0
  %v700 = vmax.f32 %v454, 0.0
  %v701 = vmax.f32 %v459, 0.0
  %v702 = vmax.f32 %v464, 0.0
  %v703 = vmax.f32 %v469, 0.0
  %v704 = vmax.f32 %v474, 0.0
  %v705 = vmax.f32 %v479, 0.0
  %v706 = vmax.f32 %v484, 0.0
  %v707 = vmax.f32 %v489, 0.0
  %v708 = vmax.f32 %v494, 0.0
  %v709 = vmax.f32 %v499, 0.0
  %v710 = vmax.f32 %v504, 0.0
  %v711 = vmax.f32 %v509, 0.0
  %v712 = vmax.f32 %v514, 0.0
  %v713 = vmax.f32 %v519, 0.0
  %v714 = vmax.f32 %v524, 0.0
  %v715 = vmax.f32 %v529, 0.0
  %v716 = vmax.f32 %v534, 0.0
  %v717 = vmax.f32 %v539, 0.0
  %v718 = vmax.f32 %v544, 0.0
  %v719 = vmax.f32 %v549, 0.0
  %v720 = vmax.f32 %v554, 0.0
  %v721 = vmax.f32 %v559, 0.0
  %v722 = vmax.f32 %v564, 0.0
  %v723 = vmax.f32 %v569, 0.0
  %v724 = vmax.f32 %v574, 0.0
  %v725 = vmax.f32 %v579, 0.0
  %v726 = vmax.f32 %v584, 0.0
  %v727 = vmax.f32 %v589, 0.0
  %v728 = vmax.f32 %v594, 0.0
  %v729 = vmax.f32 %v599, 0.0
  %v730 = vmax.f32 %v604, 0.0
  %v731 = vmax.f32 %v609, 0.0
  %v732 = vmax.f32 %v614, 0.0
  %v733 = vmax.f32 %v619, 0.0
  %v734 = vmax.f32 %v624, 0.0
  %v735 = vmax.f32 %v629, 0.0
  %v736 = vmax.f32 %v634, 0.0
  %v737 = vmax.f32 %v639, 0.0
  %v738 = vmax.f32 %v644, 0.0
  %v739 = vmax.f32 %v649, 0.0
  %v740 = vmax.f32 %v654, 0.0
  %v741 = vmax.f32 %v659, 0.0
  %v742 = vmax.f32 %v664, 0.0
  %v743 = vmax.f32 %v669, 0.0
  %v744 = vmax.f32 %v674, 0.0
  %v745 = vmax.f32 %v679, 0.0
  %v746 = vld [vmem:[%s4] sm:$0xff]
  %v747 = vld [vmem:[%s4 + $0x8] sm:$0xff]
  %vm748 = vcmask 130048
  %v750 = vsel %vm748, %v682, 0
  %v753 = vsel %vm748, %v683, 0
  %v756 = vsel %vm748, %v684, 0
  %v759 = vsel %vm748, %v685, 0
  %v762 = vsel %vm748, %v686, 0
  %v765 = vsel %vm748, %v687, 0
  %v768 = vsel %vm748, %v688, 0
  %v771 = vsel %vm748, %v689, 0
  %v774 = vsel %vm748, %v690, 0
  %v777 = vsel %vm748, %v691, 0
  %v780 = vsel %vm748, %v692, 0
  %v783 = vsel %vm748, %v693, 0
  %v786 = vsel %vm748, %v694, 0
  %v789 = vsel %vm748, %v695, 0
  %v792 = vsel %vm748, %v696, 0
  %v795 = vsel %vm748, %v697, 0
  %v798 = vsel %vm748, %v698, 0
  %v801 = vsel %vm748, %v699, 0
  %v804 = vsel %vm748, %v700, 0
  %v807 = vsel %vm748, %v701, 0
  %v810 = vsel %vm748, %v702, 0
  %v813 = vsel %vm748, %v703, 0
  %v816 = vsel %vm748, %v704, 0
  %v819 = vsel %vm748, %v705, 0
  %v822 = vsel %vm748, %v706, 0
  %v825 = vsel %vm748, %v707, 0
  %v828 = vsel %vm748, %v708, 0
  %v831 = vsel %vm748, %v709, 0
  %v834 = vsel %vm748, %v710, 0
  %v837 = vsel %vm748, %v711, 0
  %v840 = vsel %vm748, %v712, 0
  %v843 = vsel %vm748, %v713, 0
  %v846 = vsel %vm748, %v714, 0
  %v849 = vsel %vm748, %v715, 0
  %v852 = vsel %vm748, %v716, 0
  %v855 = vsel %vm748, %v717, 0
  %v858 = vsel %vm748, %v718, 0
  %v861 = vsel %vm748, %v719, 0
  %v864 = vsel %vm748, %v720, 0
  %v867 = vsel %vm748, %v721, 0
  %v870 = vsel %vm748, %v722, 0
  %v873 = vsel %vm748, %v723, 0
  %v876 = vsel %vm748, %v724, 0
  %v879 = vsel %vm748, %v725, 0
  %v882 = vsel %vm748, %v726, 0
  %v885 = vsel %vm748, %v727, 0
  %v888 = vsel %vm748, %v728, 0
  %v891 = vsel %vm748, %v729, 0
  %v894 = vsel %vm748, %v730, 0
  %v897 = vsel %vm748, %v731, 0
  %v900 = vsel %vm748, %v732, 0
  %v903 = vsel %vm748, %v733, 0
  %v906 = vsel %vm748, %v734, 0
  %v909 = vsel %vm748, %v735, 0
  %v912 = vsel %vm748, %v736, 0
  %v915 = vsel %vm748, %v737, 0
  %v918 = vsel %vm748, %v738, 0
  %v921 = vsel %vm748, %v739, 0
  %v924 = vsel %vm748, %v740, 0
  %v927 = vsel %vm748, %v741, 0
  %v930 = vsel %vm748, %v742, 0
  %v933 = vsel %vm748, %v743, 0
  %v936 = vsel %vm748, %v744, 0
  %v939 = vsel %vm748, %v745, 0
  %941 = vmatprep.subr.mxu0 0.0
  %942 = vmatpush1.msra.mxu0 %v746
  %943 = vmatprep.subr.mxu0 0.0
  %944 = vmatpush1.msra.mxu0 %v747
  %945 = vmatprep.subr.mxu0 0.0
  %946 = vmatpush1.msra.mxu0 0.0
  %947 = vmatprep.subr.mxu0 0.0
  %948 = vmatpush1.msra.mxu0 0.0
  %949 = vmatprep.subr.mxu0 0.0
  %950 = vmatpush1.msra.mxu0 0.0
  %951 = vmatprep.subr.mxu0 0.0
  %952 = vmatpush1.msra.mxu0 0.0
  %953 = vmatprep.subr.mxu0 0.0
  %954 = vmatpush1.msra.mxu0 0.0
  %955 = vmatprep.subr.mxu0 0.0
  %956 = vmatpush1.msra.mxu0 0.0
  %957 = vmatprep.subr.mxu0 0.0
  %958 = vmatpush1.msra.mxu0 0.0
  %959 = vmatprep.subr.mxu0 0.0
  %960 = vmatpush1.msra.mxu0 0.0
  %961 = vmatprep.subr.mxu0 0.0
  %962 = vmatpush1.msra.mxu0 0.0
  %963 = vmatprep.subr.mxu0 0.0
  %964 = vmatpush1.msra.mxu0 0.0
  %965 = vmatprep.subr.mxu0 0.0
  %966 = vmatpush1.msra.mxu0 0.0
  %967 = vmatprep.subr.mxu0 0.0
  %968 = vmatpush1.msra.mxu0 0.0
  %969 = vmatprep.subr.mxu0 0.0
  %970 = vmatpush1.msra.mxu0 0.0
  %971 = vmatprep.subr.mxu0 0.0
  %972 = vmatpush1.msra.mxu0 0.0
  %973 = vmatprep.subr.mxu0 0.0
  %974 = vmatpush1.msra.mxu0 0.0
  %975 = vmatprep.subr.mxu0 0.0
  %976 = vmatpush1.msra.mxu0 0.0
  %977 = vmatprep.subr.mxu0 0.0
  %978 = vmatpush1.msra.mxu0 0.0
  %979 = vmatprep.subr.mxu0 0.0
  %980 = vmatpush1.msra.mxu0 0.0
  %981 = vmatprep.subr.mxu0 0.0
  %982 = vmatpush1.msra.mxu0 0.0
  %983 = vmatprep.subr.mxu0 0.0
  %984 = vmatpush1.msra.mxu0 0.0
  %985 = vmatprep.subr.mxu0 0.0
  %986 = vmatpush1.msra.mxu0 0.0
  %987 = vmatprep.subr.mxu0 0.0
  %988 = vmatpush1.msra.mxu0 0.0
  %989 = vmatprep.subr.mxu0 0.0
  %990 = vmatpush1.msra.mxu0 0.0
  %991 = vmatprep.subr.mxu0 0.0
  %992 = vmatpush1.msra.mxu0 0.0
  %993 = vmatprep.subr.mxu0 0.0
  %994 = vmatpush1.msra.mxu0 0.0
  %995 = vmatprep.subr.mxu0 0.0
  %996 = vmatpush1.msra.mxu0 0.0
  %997 = vmatprep.subr.mxu0 0.0
  %998 = vmatpush1.msra.mxu0 0.0
  %999 = vmatprep.subr.mxu0 0.0
  %1000 = vmatpush1.msra.mxu0 0.0
  %1001 = vmatprep.subr.mxu0 0.0
  %1002 = vmatpush1.msra.mxu0 0.0
  %1003 = vmatprep.subr.mxu0 0.0
  %1004 = vmatpush1.msra.mxu0 0.0
  %1005 = vmatprep.mubr.f32.mxu0 0.0
  %1006 = vmatmul.mubr.f32.gmra.mrb[0].mxu0 %v750
  %v1007 = vpop.f32.mrb[0].mxu0
  %v1008 = vadd.f32 0.0, %v1007
  %v1009 = vpop.f32.mrb[0].mxu0
  %1010 = vmatprep.mubr.f32.mxu0 0.0
  %1011 = vmatmul.mubr.f32.gmra.mrb[0].mxu0 %v753
  %v1012 = vpop.f32.mrb[0].mxu0
  %v1013 = vadd.f32 0.0, %v1012
  %v1014 = vpop.f32.mrb[0].mxu0
  %1015 = vmatprep.mubr.f32.mxu0 0.0
  %1016 = vmatmul.mubr.f32.gmra.mrb[0].mxu0 %v756
  %v1017 = vpop.f32.mrb[0].mxu0
  %v1018 = vadd.f32 0.0, %v1017
  %v1019 = vpop.f32.mrb[0].mxu0
  %1020 = vmatprep.mubr.f32.mxu0 0.0
  %1021 = vmatmul.mubr.f32.gmra.mrb[0].mxu0 %v759
  %v1022 = vpop.f32.mrb[0].mxu0
  %v1023 = vadd.f32 0.0, %v1022
  %v1024 = vpop.f32.mrb[0].mxu0
  %1025 = vmatprep.mubr.f32.mxu0 0.0
  %1026 = vmatmul.mubr.f32.gmra.mrb[0].mxu0 %v762
  %v1027 = vpop.f32.mrb[0].mxu0
  %v1028 = vadd.f32 0.0, %v1027
  %v1029 = vpop.f32.mrb[0].mxu0
  %1030 = vmatprep.mubr.f32.mxu0 0.0
  %1031 = vmatmul.mubr.f32.gmra.mrb[0].mxu0 %v765
  %v1032 = vpop.f32.mrb[0].mxu0
  %v1033 = vadd.f32 0.0, %v1032
  %v1034 = vpop.f32.mrb[0].mxu0
  %1035 = vmatprep.mubr.f32.mxu0 0.0
  %1036 = vmatmul.mubr.f32.gmra.mrb[0].mxu0 %v768
  %v1037 = vpop.f32.mrb[0].mxu0
  %v1038 = vadd.f32 0.0, %v1037
  %v1039 = vpop.f32.mrb[0].mxu0
  %1040 = vmatprep.mubr.f32.mxu0 0.0
  %1041 = vmatmul.mubr.f32.gmra.mrb[0].mxu0 %v771
  %v1042 = vpop.f32.mrb[0].mxu0
  %v1043 = vadd.f32 0.0, %v1042
  %v1044 = vpop.f32.mrb[0].mxu0
  %1045 = vmatprep.mubr.f32.mxu0 0.0
  %1046 = vmatmul.mubr.f32.gmra.mrb[0].mxu0 %v774
  %v1047 = vpop.f32.mrb[0].mxu0
  %v1048 = vadd.f32 0.0, %v1047
  %v1049 = vpop.f32.mrb[0].mxu0
  %1050 = vmatprep.mubr.f32.mxu0 0.0
  %1051 = vmatmul.mubr.f32.gmra.mrb[0].mxu0 %v777
  %v1052 = vpop.f32.mrb[0].mxu0
  %v1053 = vadd.f32 0.0, %v1052
  %v1054 = vpop.f32.mrb[0].mxu0
  %1055 = vmatprep.mubr.f32.mxu0 0.0
  %1056 = vmatmul.mubr.f32.gmra.mrb[0].mxu0 %v780
  %v1057 = vpop.f32.mrb[0].mxu0
  %v1058 = vadd.f32 0.0, %v1057
  %v1059 = vpop.f32.mrb[0].mxu0
  %1060 = vmatprep.mubr.f32.mxu0 0.0
  %1061 = vmatmul.mubr.f32.gmra.mrb[0].mxu0 %v783
  %v1062 = vpop.f32.mrb[0].mxu0
  %v1063 = vadd.f32 0.0, %v1062
  %v1064 = vpop.f32.mrb[0].mxu0
  %1065 = vmatprep.mubr.f32.mxu0 0.0
  %1066 = vmatmul.mubr.f32.gmra.mrb[0].mxu0 %v786
  %v1067 = vpop.f32.mrb[0].mxu0
  %v1068 = vadd.f32 0.0, %v1067
  %v1069 = vpop.f32.mrb[0].mxu0
  %1070 = vmatprep.mubr.f32.mxu0 0.0
  %1071 = vmatmul.mubr.f32.gmra.mrb[0].mxu0 %v789
  %v1072 = vpop.f32.mrb[0].mxu0
  %v1073 = vadd.f32 0.0, %v1072
  %v1074 = vpop.f32.mrb[0].mxu0
  %1075 = vmatprep.mubr.f32.mxu0 0.0
  %1076 = vmatmul.mubr.f32.gmra.mrb[0].mxu0 %v792
  %v1077 = vpop.f32.mrb[0].mxu0
  %v1078 = vadd.f32 0.0, %v1077
  %v1079 = vpop.f32.mrb[0].mxu0
  %1080 = vmatprep.mubr.f32.mxu0 0.0
  %1081 = vmatmul.mubr.f32.gmra.mrb[0].mxu0 %v795
  %v1082 = vpop.f32.mrb[0].mxu0
  %v1083 = vadd.f32 0.0, %v1082
  %v1084 = vpop.f32.mrb[0].mxu0
  %1085 = vmatprep.mubr.f32.mxu0 0.0
  %1086 = vmatmul.mubr.f32.gmra.mrb[0].mxu0 %v798
  %v1087 = vpop.f32.mrb[0].mxu0
  %v1088 = vadd.f32 0.0, %v1087
  %v1089 = vpop.f32.mrb[0].mxu0
  %1090 = vmatprep.mubr.f32.mxu0 0.0
  %1091 = vmatmul.mubr.f32.gmra.mrb[0].mxu0 %v801
  %v1092 = vpop.f32.mrb[0].mxu0
  %v1093 = vadd.f32 0.0, %v1092
  %v1094 = vpop.f32.mrb[0].mxu0
  %1095 = vmatprep.mubr.f32.mxu0 0.0
  %1096 = vmatmul.mubr.f32.gmra.mrb[0].mxu0 %v804
  %v1097 = vpop.f32.mrb[0].mxu0
  %v1098 = vadd.f32 0.0, %v1097
  %v1099 = vpop.f32.mrb[0].mxu0
  %1100 = vmatprep.mubr.f32.mxu0 0.0
  %1101 = vmatmul.mubr.f32.gmra.mrb[0].mxu0 %v807
  %v1102 = vpop.f32.mrb[0].mxu0
  %v1103 = vadd.f32 0.0, %v1102
  %v1104 = vpop.f32.mrb[0].mxu0
  %1105 = vmatprep.mubr.f32.mxu0 0.0
  %1106 = vmatmul.mubr.f32.gmra.mrb[0].mxu0 %v810
  %v1107 = vpop.f32.mrb[0].mxu0
  %v1108 = vadd.f32 0.0, %v1107
  %v1109 = vpop.f32.mrb[0].mxu0
  %1110 = vmatprep.mubr.f32.mxu0 0.0
  %1111 = vmatmul.mubr.f32.gmra.mrb[0].mxu0 %v813
  %v1112 = vpop.f32.mrb[0].mxu0
  %v1113 = vadd.f32 0.0, %v1112
  %v1114 = vpop.f32.mrb[0].mxu0
  %1115 = vmatprep.mubr.f32.mxu0 0.0
  %1116 = vmatmul.mubr.f32.gmra.mrb[0].mxu0 %v816
  %v1117 = vpop.f32.mrb[0].mxu0
  %v1118 = vadd.f32 0.0, %v1117
  %v1119 = vpop.f32.mrb[0].mxu0
  %1120 = vmatprep.mubr.f32.mxu0 0.0
  %1121 = vmatmul.mubr.f32.gmra.mrb[0].mxu0 %v819
  %v1122 = vpop.f32.mrb[0].mxu0
  %v1123 = vadd.f32 0.0, %v1122
  %v1124 = vpop.f32.mrb[0].mxu0
  %1125 = vmatprep.mubr.f32.mxu0 0.0
  %1126 = vmatmul.mubr.f32.gmra.mrb[0].mxu0 %v822
  %v1127 = vpop.f32.mrb[0].mxu0
  %v1128 = vadd.f32 0.0, %v1127
  %v1129 = vpop.f32.mrb[0].mxu0
  %1130 = vmatprep.mubr.f32.mxu0 0.0
  %1131 = vmatmul.mubr.f32.gmra.mrb[0].mxu0 %v825
  %v1132 = vpop.f32.mrb[0].mxu0
  %v1133 = vadd.f32 0.0, %v1132
  %v1134 = vpop.f32.mrb[0].mxu0
  %1135 = vmatprep.mubr.f32.mxu0 0.0
  %1136 = vmatmul.mubr.f32.gmra.mrb[0].mxu0 %v828
  %v1137 = vpop.f32.mrb[0].mxu0
  %v1138 = vadd.f32 0.0, %v1137
  %v1139 = vpop.f32.mrb[0].mxu0
  %1140 = vmatprep.mubr.f32.mxu0 0.0
  %1141 = vmatmul.mubr.f32.gmra.mrb[0].mxu0 %v831
  %v1142 = vpop.f32.mrb[0].mxu0
  %v1143 = vadd.f32 0.0, %v1142
  %v1144 = vpop.f32.mrb[0].mxu0
  %1145 = vmatprep.mubr.f32.mxu0 0.0
  %1146 = vmatmul.mubr.f32.gmra.mrb[0].mxu0 %v834
  %v1147 = vpop.f32.mrb[0].mxu0
  %v1148 = vadd.f32 0.0, %v1147
  %v1149 = vpop.f32.mrb[0].mxu0
  %1150 = vmatprep.mubr.f32.mxu0 0.0
  %1151 = vmatmul.mubr.f32.gmra.mrb[0].mxu0 %v837
  %v1152 = vpop.f32.mrb[0].mxu0
  %v1153 = vadd.f32 0.0, %v1152
  %v1154 = vpop.f32.mrb[0].mxu0
  %1155 = vmatprep.mubr.f32.mxu0 0.0
  %1156 = vmatmul.mubr.f32.gmra.mrb[0].mxu0 %v840
  %v1157 = vpop.f32.mrb[0].mxu0
  %v1158 = vadd.f32 0.0, %v1157
  %v1159 = vpop.f32.mrb[0].mxu0
  %1160 = vmatprep.mubr.f32.mxu0 0.0
  %1161 = vmatmul.mubr.f32.gmra.mrb[0].mxu0 %v843
  %v1162 = vpop.f32.mrb[0].mxu0
  %v1163 = vadd.f32 0.0, %v1162
  %v1164 = vpop.f32.mrb[0].mxu0
  %1165 = vmatprep.mubr.f32.mxu0 0.0
  %1166 = vmatmul.mubr.f32.gmra.mrb[0].mxu0 %v846
  %v1167 = vpop.f32.mrb[0].mxu0
  %v1168 = vadd.f32 0.0, %v1167
  %v1169 = vpop.f32.mrb[0].mxu0
  %1170 = vmatprep.mubr.f32.mxu0 0.0
  %1171 = vmatmul.mubr.f32.gmra.mrb[0].mxu0 %v849
  %v1172 = vpop.f32.mrb[0].mxu0
  %v1173 = vadd.f32 0.0, %v1172
  %v1174 = vpop.f32.mrb[0].mxu0
  %1175 = vmatprep.mubr.f32.mxu0 0.0
  %1176 = vmatmul.mubr.f32.gmra.mrb[0].mxu0 %v852
  %v1177 = vpop.f32.mrb[0].mxu0
  %v1178 = vadd.f32 0.0, %v1177
  %v1179 = vpop.f32.mrb[0].mxu0
  %1180 = vmatprep.mubr.f32.mxu0 0.0
  %1181 = vmatmul.mubr.f32.gmra.mrb[0].mxu0 %v855
  %v1182 = vpop.f32.mrb[0].mxu0
  %v1183 = vadd.f32 0.0, %v1182
  %v1184 = vpop.f32.mrb[0].mxu0
  %1185 = vmatprep.mubr.f32.mxu0 0.0
  %1186 = vmatmul.mubr.f32.gmra.mrb[0].mxu0 %v858
  %v1187 = vpop.f32.mrb[0].mxu0
  %v1188 = vadd.f32 0.0, %v1187
  %v1189 = vpop.f32.mrb[0].mxu0
  %1190 = vmatprep.mubr.f32.mxu0 0.0
  %1191 = vmatmul.mubr.f32.gmra.mrb[0].mxu0 %v861
  %v1192 = vpop.f32.mrb[0].mxu0
  %v1193 = vadd.f32 0.0, %v1192
  %v1194 = vpop.f32.mrb[0].mxu0
  %1195 = vmatprep.mubr.f32.mxu0 0.0
  %1196 = vmatmul.mubr.f32.gmra.mrb[0].mxu0 %v864
  %v1197 = vpop.f32.mrb[0].mxu0
  %v1198 = vadd.f32 0.0, %v1197
  %v1199 = vpop.f32.mrb[0].mxu0
  %1200 = vmatprep.mubr.f32.mxu0 0.0
  %1201 = vmatmul.mubr.f32.gmra.mrb[0].mxu0 %v867
  %v1202 = vpop.f32.mrb[0].mxu0
  %v1203 = vadd.f32 0.0, %v1202
  %v1204 = vpop.f32.mrb[0].mxu0
  %1205 = vmatprep.mubr.f32.mxu0 0.0
  %1206 = vmatmul.mubr.f32.gmra.mrb[0].mxu0 %v870
  %v1207 = vpop.f32.mrb[0].mxu0
  %v1208 = vadd.f32 0.0, %v1207
  %v1209 = vpop.f32.mrb[0].mxu0
  %1210 = vmatprep.mubr.f32.mxu0 0.0
  %1211 = vmatmul.mubr.f32.gmra.mrb[0].mxu0 %v873
  %v1212 = vpop.f32.mrb[0].mxu0
  %v1213 = vadd.f32 0.0, %v1212
  %v1214 = vpop.f32.mrb[0].mxu0
  %1215 = vmatprep.mubr.f32.mxu0 0.0
  %1216 = vmatmul.mubr.f32.gmra.mrb[0].mxu0 %v876
  %v1217 = vpop.f32.mrb[0].mxu0
  %v1218 = vadd.f32 0.0, %v1217
  %v1219 = vpop.f32.mrb[0].mxu0
  %1220 = vmatprep.mubr.f32.mxu0 0.0
  %1221 = vmatmul.mubr.f32.gmra.mrb[0].mxu0 %v879
  %v1222 = vpop.f32.mrb[0].mxu0
  %v1223 = vadd.f32 0.0, %v1222
  %v1224 = vpop.f32.mrb[0].mxu0
  %1225 = vmatprep.mubr.f32.mxu0 0.0
  %1226 = vmatmul.mubr.f32.gmra.mrb[0].mxu0 %v882
  %v1227 = vpop.f32.mrb[0].mxu0
  %v1228 = vadd.f32 0.0, %v1227
  %v1229 = vpop.f32.mrb[0].mxu0
  %1230 = vmatprep.mubr.f32.mxu0 0.0
  %1231 = vmatmul.mubr.f32.gmra.mrb[0].mxu0 %v885
  %v1232 = vpop.f32.mrb[0].mxu0
  %v1233 = vadd.f32 0.0, %v1232
  %v1234 = vpop.f32.mrb[0].mxu0
  %1235 = vmatprep.mubr.f32.mxu0 0.0
  %1236 = vmatmul.mubr.f32.gmra.mrb[0].mxu0 %v888
  %v1237 = vpop.f32.mrb[0].mxu0
  %v1238 = vadd.f32 0.0, %v1237
  %v1239 = vpop.f32.mrb[0].mxu0
  %1240 = vmatprep.mubr.f32.mxu0 0.0
  %1241 = vmatmul.mubr.f32.gmra.mrb[0].mxu0 %v891
  %v1242 = vpop.f32.mrb[0].mxu0
  %v1243 = vadd.f32 0.0, %v1242
  %v1244 = vpop.f32.mrb[0].mxu0
  %1245 = vmatprep.mubr.f32.mxu0 0.0
  %1246 = vmatmul.mubr.f32.gmra.mrb[0].mxu0 %v894
  %v1247 = vpop.f32.mrb[0].mxu0
  %v1248 = vadd.f32 0.0, %v1247
  %v1249 = vpop.f32.mrb[0].mxu0
  %1250 = vmatprep.mubr.f32.mxu0 0.0
  %1251 = vmatmul.mubr.f32.gmra.mrb[0].mxu0 %v897
  %v1252 = vpop.f32.mrb[0].mxu0
  %v1253 = vadd.f32 0.0, %v1252
  %v1254 = vpop.f32.mrb[0].mxu0
  %1255 = vmatprep.mubr.f32.mxu0 0.0
  %1256 = vmatmul.mubr.f32.gmra.mrb[0].mxu0 %v900
  %v1257 = vpop.f32.mrb[0].mxu0
  %v1258 = vadd.f32 0.0, %v1257
  %v1259 = vpop.f32.mrb[0].mxu0
  %1260 = vmatprep.mubr.f32.mxu0 0.0
  %1261 = vmatmul.mubr.f32.gmra.mrb[0].mxu0 %v903
  %v1262 = vpop.f32.mrb[0].mxu0
  %v1263 = vadd.f32 0.0, %v1262
  %v1264 = vpop.f32.mrb[0].mxu0
  %1265 = vmatprep.mubr.f32.mxu0 0.0
  %1266 = vmatmul.mubr.f32.gmra.mrb[0].mxu0 %v906
  %v1267 = vpop.f32.mrb[0].mxu0
  %v1268 = vadd.f32 0.0, %v1267
  %v1269 = vpop.f32.mrb[0].mxu0
  %1270 = vmatprep.mubr.f32.mxu0 0.0
  %1271 = vmatmul.mubr.f32.gmra.mrb[0].mxu0 %v909
  %v1272 = vpop.f32.mrb[0].mxu0
  %v1273 = vadd.f32 0.0, %v1272
  %v1274 = vpop.f32.mrb[0].mxu0
  %1275 = vmatprep.mubr.f32.mxu0 0.0
  %1276 = vmatmul.mubr.f32.gmra.mrb[0].mxu0 %v912
  %v1277 = vpop.f32.mrb[0].mxu0
  %v1278 = vadd.f32 0.0, %v1277
  %v1279 = vpop.f32.mrb[0].mxu0
  %1280 = vmatprep.mubr.f32.mxu0 0.0
  %1281 = vmatmul.mubr.f32.gmra.mrb[0].mxu0 %v915
  %v1282 = vpop.f32.mrb[0].mxu0
  %v1283 = vadd.f32 0.0, %v1282
  %v1284 = vpop.f32.mrb[0].mxu0
  %1285 = vmatprep.mubr.f32.mxu0 0.0
  %1286 = vmatmul.mubr.f32.gmra.mrb[0].mxu0 %v918
  %v1287 = vpop.f32.mrb[0].mxu0
  %v1288 = vadd.f32 0.0, %v1287
  %v1289 = vpop.f32.mrb[0].mxu0
  %1290 = vmatprep.mubr.f32.mxu0 0.0
  %1291 = vmatmul.mubr.f32.gmra.mrb[0].mxu0 %v921
  %v1292 = vpop.f32.mrb[0].mxu0
  %v1293 = vadd.f32 0.0, %v1292
  %v1294 = vpop.f32.mrb[0].mxu0
  %1295 = vmatprep.mubr.f32.mxu0 0.0
  %1296 = vmatmul.mubr.f32.gmra.mrb[0].mxu0 %v924
  %v1297 = vpop.f32.mrb[0].mxu0
  %v1298 = vadd.f32 0.0, %v1297
  %v1299 = vpop.f32.mrb[0].mxu0
  %1300 = vmatprep.mubr.f32.mxu0 0.0
  %1301 = vmatmul.mubr.f32.gmra.mrb[0].mxu0 %v927
  %v1302 = vpop.f32.mrb[0].mxu0
  %v1303 = vadd.f32 0.0, %v1302
  %v1304 = vpop.f32.mrb[0].mxu0
  %1305 = vmatprep.mubr.f32.mxu0 0.0
  %1306 = vmatmul.mubr.f32.gmra.mrb[0].mxu0 %v930
  %v1307 = vpop.f32.mrb[0].mxu0
  %v1308 = vadd.f32 0.0, %v1307
  %v1309 = vpop.f32.mrb[0].mxu0
  %1310 = vmatprep.mubr.f32.mxu0 0.0
  %1311 = vmatmul.mubr.f32.gmra.mrb[0].mxu0 %v933
  %v1312 = vpop.f32.mrb[0].mxu0
  %v1313 = vadd.f32 0.0, %v1312
  %v1314 = vpop.f32.mrb[0].mxu0
  %1315 = vmatprep.mubr.f32.mxu0 0.0
  %1316 = vmatmul.mubr.f32.gmra.mrb[0].mxu0 %v936
  %v1317 = vpop.f32.mrb[0].mxu0
  %v1318 = vadd.f32 0.0, %v1317
  %v1319 = vpop.f32.mrb[0].mxu0
  %1320 = vmatprep.mubr.f32.mxu0 0.0
  %1321 = vmatmul.mubr.f32.gmra.mrb[0].mxu0 %v939
  %v1322 = vpop.f32.mrb[0].mxu0
  %v1323 = vadd.f32 0.0, %v1322
  %v1324 = vpop.f32.mrb[0].mxu0
  %1325 = vdwg.mxu0
  %1326 = vst.msk [vmem:[%s7] sm:$0xff] %vm748, %v1008
  %1327 = vst.msk [vmem:[%s7 + $0x8] sm:$0xff] %vm748, %v1013
  %1328 = vst.msk [vmem:[%s7 + $0x10] sm:$0xff] %vm748, %v1018
  %1329 = vst.msk [vmem:[%s7 + $0x18] sm:$0xff] %vm748, %v1023
  %1330 = vst.msk [vmem:[%s7 + $0x20] sm:$0xff] %vm748, %v1028
  %1331 = vst.msk [vmem:[%s7 + $0x28] sm:$0xff] %vm748, %v1033
  %1332 = vst.msk [vmem:[%s7 + $0x30] sm:$0xff] %vm748, %v1038
  %1333 = vst.msk [vmem:[%s7 + $0x38] sm:$0xff] %vm748, %v1043
  %1334 = vst.msk [vmem:[%s7 + $0x40] sm:$0xff] %vm748, %v1048
  %1335 = vst.msk [vmem:[%s7 + $0x48] sm:$0xff] %vm748, %v1053
  %1336 = vst.msk [vmem:[%s7 + $0x50] sm:$0xff] %vm748, %v1058
  %1337 = vst.msk [vmem:[%s7 + $0x58] sm:$0xff] %vm748, %v1063
  %1338 = vst.msk [vmem:[%s7 + $0x60] sm:$0xff] %vm748, %v1068
  %1339 = vst.msk [vmem:[%s7 + $0x68] sm:$0xff] %vm748, %v1073
  %1340 = vst.msk [vmem:[%s7 + $0x70] sm:$0xff] %vm748, %v1078
  %1341 = vst.msk [vmem:[%s7 + $0x78] sm:$0xff] %vm748, %v1083
  %1342 = vst.msk [vmem:[%s7 + $0x80] sm:$0xff] %vm748, %v1088
  %1343 = vst.msk [vmem:[%s7 + $0x88] sm:$0xff] %vm748, %v1093
  %1344 = vst.msk [vmem:[%s7 + $0x90] sm:$0xff] %vm748, %v1098
  %1345 = vst.msk [vmem:[%s7 + $0x98] sm:$0xff] %vm748, %v1103
  %1346 = vst.msk [vmem:[%s7 + $0xa0] sm:$0xff] %vm748, %v1108
  %1347 = vst.msk [vmem:[%s7 + $0xa8] sm:$0xff] %vm748, %v1113
  %1348 = vst.msk [vmem:[%s7 + $0xb0] sm:$0xff] %vm748, %v1118
  %1349 = vst.msk [vmem:[%s7 + $0xb8] sm:$0xff] %vm748, %v1123
  %1350 = vst.msk [vmem:[%s7 + $0xc0] sm:$0xff] %vm748, %v1128
  %1351 = vst.msk [vmem:[%s7 + $0xc8] sm:$0xff] %vm748, %v1133
  %1352 = vst.msk [vmem:[%s7 + $0xd0] sm:$0xff] %vm748, %v1138
  %1353 = vst.msk [vmem:[%s7 + $0xd8] sm:$0xff] %vm748, %v1143
  %1354 = vst.msk [vmem:[%s7 + $0xe0] sm:$0xff] %vm748, %v1148
  %1355 = vst.msk [vmem:[%s7 + $0xe8] sm:$0xff] %vm748, %v1153
  %1356 = vst.msk [vmem:[%s7 + $0xf0] sm:$0xff] %vm748, %v1158
  %1357 = vst.msk [vmem:[%s7 + $0xf8] sm:$0xff] %vm748, %v1163
  %1358 = vst.msk [vmem:[%s7 + $0x100] sm:$0xff] %vm748, %v1168
  %1359 = vst.msk [vmem:[%s7 + $0x108] sm:$0xff] %vm748, %v1173
  %1360 = vst.msk [vmem:[%s7 + $0x110] sm:$0xff] %vm748, %v1178
  %1361 = vst.msk [vmem:[%s7 + $0x118] sm:$0xff] %vm748, %v1183
  %1362 = vst.msk [vmem:[%s7 + $0x120] sm:$0xff] %vm748, %v1188
  %1363 = vst.msk [vmem:[%s7 + $0x128] sm:$0xff] %vm748, %v1193
  %1364 = vst.msk [vmem:[%s7 + $0x130] sm:$0xff] %vm748, %v1198
  %1365 = vst.msk [vmem:[%s7 + $0x138] sm:$0xff] %vm748, %v1203
  %1366 = vst.msk [vmem:[%s7 + $0x140] sm:$0xff] %vm748, %v1208
  %1367 = vst.msk [vmem:[%s7 + $0x148] sm:$0xff] %vm748, %v1213
  %1368 = vst.msk [vmem:[%s7 + $0x150] sm:$0xff] %vm748, %v1218
  %1369 = vst.msk [vmem:[%s7 + $0x158] sm:$0xff] %vm748, %v1223
  %1370 = vst.msk [vmem:[%s7 + $0x160] sm:$0xff] %vm748, %v1228
  %1371 = vst.msk [vmem:[%s7 + $0x168] sm:$0xff] %vm748, %v1233
  %1372 = vst.msk [vmem:[%s7 + $0x170] sm:$0xff] %vm748, %v1238
  %1373 = vst.msk [vmem:[%s7 + $0x178] sm:$0xff] %vm748, %v1243
  %1374 = vst.msk [vmem:[%s7 + $0x180] sm:$0xff] %vm748, %v1248
  %1375 = vst.msk [vmem:[%s7 + $0x188] sm:$0xff] %vm748, %v1253
  %1376 = vst.msk [vmem:[%s7 + $0x190] sm:$0xff] %vm748, %v1258
  %1377 = vst.msk [vmem:[%s7 + $0x198] sm:$0xff] %vm748, %v1263
  %1378 = vst.msk [vmem:[%s7 + $0x1a0] sm:$0xff] %vm748, %v1268
  %1379 = vst.msk [vmem:[%s7 + $0x1a8] sm:$0xff] %vm748, %v1273
  %1380 = vst.msk [vmem:[%s7 + $0x1b0] sm:$0xff] %vm748, %v1278
  %1381 = vst.msk [vmem:[%s7 + $0x1b8] sm:$0xff] %vm748, %v1283
  %1382 = vst.msk [vmem:[%s7 + $0x1c0] sm:$0xff] %vm748, %v1288
  %1383 = vst.msk [vmem:[%s7 + $0x1c8] sm:$0xff] %vm748, %v1293
  %1384 = vst.msk [vmem:[%s7 + $0x1d0] sm:$0xff] %vm748, %v1298
  %1385 = vst.msk [vmem:[%s7 + $0x1d8] sm:$0xff] %vm748, %v1303
  %1386 = vst.msk [vmem:[%s7 + $0x1e0] sm:$0xff] %vm748, %v1308
  %1387 = vst.msk [vmem:[%s7 + $0x1e8] sm:$0xff] %vm748, %v1313
  %1388 = vst.msk [vmem:[%s7 + $0x1f0] sm:$0xff] %vm748, %v1318
  %1389 = vst.msk [vmem:[%s7 + $0x1f8] sm:$0xff] %vm748, %v1323
  %v1390 = vld [vmem:[%s5] sm:$0xff]
  %v1391 = vld [vmem:[%s5 + $0x8] sm:$0xff]
  %1392 = vmatprep.subr.mxu0 0.0
  %1393 = vmatpush1.msra.mxu0 %v1390
  %1394 = vmatprep.subr.mxu0 0.0
  %1395 = vmatpush1.msra.mxu0 %v1391
  %1396 = vmatprep.subr.mxu0 0.0
  %1397 = vmatpush1.msra.mxu0 0.0
  %1398 = vmatprep.subr.mxu0 0.0
  %1399 = vmatpush1.msra.mxu0 0.0
  %1400 = vmatprep.subr.mxu0 0.0
  %1401 = vmatpush1.msra.mxu0 0.0
  %1402 = vmatprep.subr.mxu0 0.0
  %1403 = vmatpush1.msra.mxu0 0.0
  %1404 = vmatprep.subr.mxu0 0.0
  %1405 = vmatpush1.msra.mxu0 0.0
  %1406 = vmatprep.subr.mxu0 0.0
  %1407 = vmatpush1.msra.mxu0 0.0
  %1408 = vmatprep.subr.mxu0 0.0
  %1409 = vmatpush1.msra.mxu0 0.0
  %1410 = vmatprep.subr.mxu0 0.0
  %1411 = vmatpush1.msra.mxu0 0.0
  %1412 = vmatprep.subr.mxu0 0.0
  %1413 = vmatpush1.msra.mxu0 0.0
  %1414 = vmatprep.subr.mxu0 0.0
  %1415 = vmatpush1.msra.mxu0 0.0
  %1416 = vmatprep.subr.mxu0 0.0
  %1417 = vmatpush1.msra.mxu0 0.0
  %1418 = vmatprep.subr.mxu0 0.0
  %1419 = vmatpush1.msra.mxu0 0.0
  %1420 = vmatprep.subr.mxu0 0.0
  %1421 = vmatpush1.msra.mxu0 0.0
  %1422 = vmatprep.subr.mxu0 0.0
  %1423 = vmatpush1.msra.mxu0 0.0
  %1424 = vmatprep.subr.mxu0 0.0
  %1425 = vmatpush1.msra.mxu0 0.0
  %1426 = vmatprep.subr.mxu0 0.0
  %1427 = vmatpush1.msra.mxu0 0.0
  %1428 = vmatprep.subr.mxu0 0.0
  %1429 = vmatpush1.msra.mxu0 0.0
  %1430 = vmatprep.subr.mxu0 0.0
  %1431 = vmatpush1.msra.mxu0 0.0
  %1432 = vmatprep.subr.mxu0 0.0
  %1433 = vmatpush1.msra.mxu0 0.0
  %1434 = vmatprep.subr.mxu0 0.0
  %1435 = vmatpush1.msra.mxu0 0.0
  %1436 = vmatprep.subr.mxu0 0.0
  %1437 = vmatpush1.msra.mxu0 0.0
  %1438 = vmatprep.subr.mxu0 0.0
  %1439 = vmatpush1.msra.mxu0 0.0
  %1440 = vmatprep.subr.mxu0 0.0
  %1441 = vmatpush1.msra.mxu0 0.0
  %1442 = vmatprep.subr.mxu0 0.0
  %1443 = vmatpush1.msra.mxu0 0.0
  %1444 = vmatprep.subr.mxu0 0.0
  %1445 = vmatpush1.msra.mxu0 0.0
  %1446 = vmatprep.subr.mxu0 0.0
  %1447 = vmatpush1.msra.mxu0 0.0
  %1448 = vmatprep.subr.mxu0 0.0
  %1449 = vmatpush1.msra.mxu0 0.0
  %1450 = vmatprep.subr.mxu0 0.0
  %1451 = vmatpush1.msra.mxu0 0.0
  %1452 = vmatprep.subr.mxu0 0.0
  %1453 = vmatpush1.msra.mxu0 0.0
  %1454 = vmatprep.subr.mxu0 0.0
  %1455 = vmatpush1.msra.mxu0 0.0
  %1456 = vmatprep.mubr.f32.mxu0 0.0
  %1457 = vmatmul.mubr.f32.gmra.mrb[0].mxu0 %v750
  %v1458 = vpop.f32.mrb[0].mxu0
  %v1459 = vadd.f32 0.0, %v1458
  %v1460 = vpop.f32.mrb[0].mxu0
  %1461 = vmatprep.mubr.f32.mxu0 0.0
  %1462 = vmatmul.mubr.f32.gmra.mrb[0].mxu0 %v753
  %v1463 = vpop.f32.mrb[0].mxu0
  %v1464 = vadd.f32 0.0, %v1463
  %v1465 = vpop.f32.mrb[0].mxu0
  %1466 = vmatprep.mubr.f32.mxu0 0.0
  %1467 = vmatmul.mubr.f32.gmra.mrb[0].mxu0 %v756
  %v1468 = vpop.f32.mrb[0].mxu0
  %v1469 = vadd.f32 0.0, %v1468
  %v1470 = vpop.f32.mrb[0].mxu0
  %1471 = vmatprep.mubr.f32.mxu0 0.0
  %1472 = vmatmul.mubr.f32.gmra.mrb[0].mxu0 %v759
  %v1473 = vpop.f32.mrb[0].mxu0
  %v1474 = vadd.f32 0.0, %v1473
  %v1475 = vpop.f32.mrb[0].mxu0
  %1476 = vmatprep.mubr.f32.mxu0 0.0
  %1477 = vmatmul.mubr.f32.gmra.mrb[0].mxu0 %v762
  %v1478 = vpop.f32.mrb[0].mxu0
  %v1479 = vadd.f32 0.0, %v1478
  %v1480 = vpop.f32.mrb[0].mxu0
  %1481 = vmatprep.mubr.f32.mxu0 0.0
  %1482 = vmatmul.mubr.f32.gmra.mrb[0].mxu0 %v765
  %v1483 = vpop.f32.mrb[0].mxu0
  %v1484 = vadd.f32 0.0, %v1483
  %v1485 = vpop.f32.mrb[0].mxu0
  %1486 = vmatprep.mubr.f32.mxu0 0.0
  %1487 = vmatmul.mubr.f32.gmra.mrb[0].mxu0 %v768
  %v1488 = vpop.f32.mrb[0].mxu0
  %v1489 = vadd.f32 0.0, %v1488
  %v1490 = vpop.f32.mrb[0].mxu0
  %1491 = vmatprep.mubr.f32.mxu0 0.0
  %1492 = vmatmul.mubr.f32.gmra.mrb[0].mxu0 %v771
  %v1493 = vpop.f32.mrb[0].mxu0
  %v1494 = vadd.f32 0.0, %v1493
  %v1495 = vpop.f32.mrb[0].mxu0
  %1496 = vmatprep.mubr.f32.mxu0 0.0
  %1497 = vmatmul.mubr.f32.gmra.mrb[0].mxu0 %v774
  %v1498 = vpop.f32.mrb[0].mxu0
  %v1499 = vadd.f32 0.0, %v1498
  %v1500 = vpop.f32.mrb[0].mxu0
  %1501 = vmatprep.mubr.f32.mxu0 0.0
  %1502 = vmatmul.mubr.f32.gmra.mrb[0].mxu0 %v777
  %v1503 = vpop.f32.mrb[0].mxu0
  %v1504 = vadd.f32 0.0, %v1503
  %v1505 = vpop.f32.mrb[0].mxu0
  %1506 = vmatprep.mubr.f32.mxu0 0.0
  %1507 = vmatmul.mubr.f32.gmra.mrb[0].mxu0 %v780
  %v1508 = vpop.f32.mrb[0].mxu0
  %v1509 = vadd.f32 0.0, %v1508
  %v1510 = vpop.f32.mrb[0].mxu0
  %1511 = vmatprep.mubr.f32.mxu0 0.0
  %1512 = vmatmul.mubr.f32.gmra.mrb[0].mxu0 %v783
  %v1513 = vpop.f32.mrb[0].mxu0
  %v1514 = vadd.f32 0.0, %v1513
  %v1515 = vpop.f32.mrb[0].mxu0
  %1516 = vmatprep.mubr.f32.mxu0 0.0
  %1517 = vmatmul.mubr.f32.gmra.mrb[0].mxu0 %v786
  %v1518 = vpop.f32.mrb[0].mxu0
  %v1519 = vadd.f32 0.0, %v1518
  %v1520 = vpop.f32.mrb[0].mxu0
  %1521 = vmatprep.mubr.f32.mxu0 0.0
  %1522 = vmatmul.mubr.f32.gmra.mrb[0].mxu0 %v789
  %v1523 = vpop.f32.mrb[0].mxu0
  %v1524 = vadd.f32 0.0, %v1523
  %v1525 = vpop.f32.mrb[0].mxu0
  %1526 = vmatprep.mubr.f32.mxu0 0.0
  %1527 = vmatmul.mubr.f32.gmra.mrb[0].mxu0 %v792
  %v1528 = vpop.f32.mrb[0].mxu0
  %v1529 = vadd.f32 0.0, %v1528
  %v1530 = vpop.f32.mrb[0].mxu0
  %1531 = vmatprep.mubr.f32.mxu0 0.0
  %1532 = vmatmul.mubr.f32.gmra.mrb[0].mxu0 %v795
  %v1533 = vpop.f32.mrb[0].mxu0
  %v1534 = vadd.f32 0.0, %v1533
  %v1535 = vpop.f32.mrb[0].mxu0
  %1536 = vmatprep.mubr.f32.mxu0 0.0
  %1537 = vmatmul.mubr.f32.gmra.mrb[0].mxu0 %v798
  %v1538 = vpop.f32.mrb[0].mxu0
  %v1539 = vadd.f32 0.0, %v1538
  %v1540 = vpop.f32.mrb[0].mxu0
  %1541 = vmatprep.mubr.f32.mxu0 0.0
  %1542 = vmatmul.mubr.f32.gmra.mrb[0].mxu0 %v801
  %v1543 = vpop.f32.mrb[0].mxu0
  %v1544 = vadd.f32 0.0, %v1543
  %v1545 = vpop.f32.mrb[0].mxu0
  %1546 = vmatprep.mubr.f32.mxu0 0.0
  %1547 = vmatmul.mubr.f32.gmra.mrb[0].mxu0 %v804
  %v1548 = vpop.f32.mrb[0].mxu0
  %v1549 = vadd.f32 0.0, %v1548
  %v1550 = vpop.f32.mrb[0].mxu0
  %1551 = vmatprep.mubr.f32.mxu0 0.0
  %1552 = vmatmul.mubr.f32.gmra.mrb[0].mxu0 %v807
  %v1553 = vpop.f32.mrb[0].mxu0
  %v1554 = vadd.f32 0.0, %v1553
  %v1555 = vpop.f32.mrb[0].mxu0
  %1556 = vmatprep.mubr.f32.mxu0 0.0
  %1557 = vmatmul.mubr.f32.gmra.mrb[0].mxu0 %v810
  %v1558 = vpop.f32.mrb[0].mxu0
  %v1559 = vadd.f32 0.0, %v1558
  %v1560 = vpop.f32.mrb[0].mxu0
  %1561 = vmatprep.mubr.f32.mxu0 0.0
  %1562 = vmatmul.mubr.f32.gmra.mrb[0].mxu0 %v813
  %v1563 = vpop.f32.mrb[0].mxu0
  %v1564 = vadd.f32 0.0, %v1563
  %v1565 = vpop.f32.mrb[0].mxu0
  %1566 = vmatprep.mubr.f32.mxu0 0.0
  %1567 = vmatmul.mubr.f32.gmra.mrb[0].mxu0 %v816
  %v1568 = vpop.f32.mrb[0].mxu0
  %v1569 = vadd.f32 0.0, %v1568
  %v1570 = vpop.f32.mrb[0].mxu0
  %1571 = vmatprep.mubr.f32.mxu0 0.0
  %1572 = vmatmul.mubr.f32.gmra.mrb[0].mxu0 %v819
  %v1573 = vpop.f32.mrb[0].mxu0
  %v1574 = vadd.f32 0.0, %v1573
  %v1575 = vpop.f32.mrb[0].mxu0
  %1576 = vmatprep.mubr.f32.mxu0 0.0
  %1577 = vmatmul.mubr.f32.gmra.mrb[0].mxu0 %v822
  %v1578 = vpop.f32.mrb[0].mxu0
  %v1579 = vadd.f32 0.0, %v1578
  %v1580 = vpop.f32.mrb[0].mxu0
  %1581 = vmatprep.mubr.f32.mxu0 0.0
  %1582 = vmatmul.mubr.f32.gmra.mrb[0].mxu0 %v825
  %v1583 = vpop.f32.mrb[0].mxu0
  %v1584 = vadd.f32 0.0, %v1583
  %v1585 = vpop.f32.mrb[0].mxu0
  %1586 = vmatprep.mubr.f32.mxu0 0.0
  %1587 = vmatmul.mubr.f32.gmra.mrb[0].mxu0 %v828
  %v1588 = vpop.f32.mrb[0].mxu0
  %v1589 = vadd.f32 0.0, %v1588
  %v1590 = vpop.f32.mrb[0].mxu0
  %1591 = vmatprep.mubr.f32.mxu0 0.0
  %1592 = vmatmul.mubr.f32.gmra.mrb[0].mxu0 %v831
  %v1593 = vpop.f32.mrb[0].mxu0
  %v1594 = vadd.f32 0.0, %v1593
  %v1595 = vpop.f32.mrb[0].mxu0
  %1596 = vmatprep.mubr.f32.mxu0 0.0
  %1597 = vmatmul.mubr.f32.gmra.mrb[0].mxu0 %v834
  %v1598 = vpop.f32.mrb[0].mxu0
  %v1599 = vadd.f32 0.0, %v1598
  %v1600 = vpop.f32.mrb[0].mxu0
  %1601 = vmatprep.mubr.f32.mxu0 0.0
  %1602 = vmatmul.mubr.f32.gmra.mrb[0].mxu0 %v837
  %v1603 = vpop.f32.mrb[0].mxu0
  %v1604 = vadd.f32 0.0, %v1603
  %v1605 = vpop.f32.mrb[0].mxu0
  %1606 = vmatprep.mubr.f32.mxu0 0.0
  %1607 = vmatmul.mubr.f32.gmra.mrb[0].mxu0 %v840
  %v1608 = vpop.f32.mrb[0].mxu0
  %v1609 = vadd.f32 0.0, %v1608
  %v1610 = vpop.f32.mrb[0].mxu0
  %1611 = vmatprep.mubr.f32.mxu0 0.0
  %1612 = vmatmul.mubr.f32.gmra.mrb[0].mxu0 %v843
  %v1613 = vpop.f32.mrb[0].mxu0
  %v1614 = vadd.f32 0.0, %v1613
  %v1615 = vpop.f32.mrb[0].mxu0
  %1616 = vmatprep.mubr.f32.mxu0 0.0
  %1617 = vmatmul.mubr.f32.gmra.mrb[0].mxu0 %v846
  %v1618 = vpop.f32.mrb[0].mxu0
  %v1619 = vadd.f32 0.0, %v1618
  %v1620 = vpop.f32.mrb[0].mxu0
  %1621 = vmatprep.mubr.f32.mxu0 0.0
  %1622 = vmatmul.mubr.f32.gmra.mrb[0].mxu0 %v849
  %v1623 = vpop.f32.mrb[0].mxu0
  %v1624 = vadd.f32 0.0, %v1623
  %v1625 = vpop.f32.mrb[0].mxu0
  %1626 = vmatprep.mubr.f32.mxu0 0.0
  %1627 = vmatmul.mubr.f32.gmra.mrb[0].mxu0 %v852
  %v1628 = vpop.f32.mrb[0].mxu0
  %v1629 = vadd.f32 0.0, %v1628
  %v1630 = vpop.f32.mrb[0].mxu0
  %1631 = vmatprep.mubr.f32.mxu0 0.0
  %1632 = vmatmul.mubr.f32.gmra.mrb[0].mxu0 %v855
  %v1633 = vpop.f32.mrb[0].mxu0
  %v1634 = vadd.f32 0.0, %v1633
  %v1635 = vpop.f32.mrb[0].mxu0
  %1636 = vmatprep.mubr.f32.mxu0 0.0
  %1637 = vmatmul.mubr.f32.gmra.mrb[0].mxu0 %v858
  %v1638 = vpop.f32.mrb[0].mxu0
  %v1639 = vadd.f32 0.0, %v1638
  %v1640 = vpop.f32.mrb[0].mxu0
  %1641 = vmatprep.mubr.f32.mxu0 0.0
  %1642 = vmatmul.mubr.f32.gmra.mrb[0].mxu0 %v861
  %v1643 = vpop.f32.mrb[0].mxu0
  %v1644 = vadd.f32 0.0, %v1643
  %v1645 = vpop.f32.mrb[0].mxu0
  %1646 = vmatprep.mubr.f32.mxu0 0.0
  %1647 = vmatmul.mubr.f32.gmra.mrb[0].mxu0 %v864
  %v1648 = vpop.f32.mrb[0].mxu0
  %v1649 = vadd.f32 0.0, %v1648
  %v1650 = vpop.f32.mrb[0].mxu0
  %1651 = vmatprep.mubr.f32.mxu0 0.0
  %1652 = vmatmul.mubr.f32.gmra.mrb[0].mxu0 %v867
  %v1653 = vpop.f32.mrb[0].mxu0
  %v1654 = vadd.f32 0.0, %v1653
  %v1655 = vpop.f32.mrb[0].mxu0
  %1656 = vmatprep.mubr.f32.mxu0 0.0
  %1657 = vmatmul.mubr.f32.gmra.mrb[0].mxu0 %v870
  %v1658 = vpop.f32.mrb[0].mxu0
  %v1659 = vadd.f32 0.0, %v1658
  %v1660 = vpop.f32.mrb[0].mxu0
  %1661 = vmatprep.mubr.f32.mxu0 0.0
  %1662 = vmatmul.mubr.f32.gmra.mrb[0].mxu0 %v873
  %v1663 = vpop.f32.mrb[0].mxu0
  %v1664 = vadd.f32 0.0, %v1663
  %v1665 = vpop.f32.mrb[0].mxu0
  %1666 = vmatprep.mubr.f32.mxu0 0.0
  %1667 = vmatmul.mubr.f32.gmra.mrb[0].mxu0 %v876
  %v1668 = vpop.f32.mrb[0].mxu0
  %v1669 = vadd.f32 0.0, %v1668
  %v1670 = vpop.f32.mrb[0].mxu0
  %1671 = vmatprep.mubr.f32.mxu0 0.0
  %1672 = vmatmul.mubr.f32.gmra.mrb[0].mxu0 %v879
  %v1673 = vpop.f32.mrb[0].mxu0
  %v1674 = vadd.f32 0.0, %v1673
  %v1675 = vpop.f32.mrb[0].mxu0
  %1676 = vmatprep.mubr.f32.mxu0 0.0
  %1677 = vmatmul.mubr.f32.gmra.mrb[0].mxu0 %v882
  %v1678 = vpop.f32.mrb[0].mxu0
  %v1679 = vadd.f32 0.0, %v1678
  %v1680 = vpop.f32.mrb[0].mxu0
  %1681 = vmatprep.mubr.f32.mxu0 0.0
  %1682 = vmatmul.mubr.f32.gmra.mrb[0].mxu0 %v885
  %v1683 = vpop.f32.mrb[0].mxu0
  %v1684 = vadd.f32 0.0, %v1683
  %v1685 = vpop.f32.mrb[0].mxu0
  %1686 = vmatprep.mubr.f32.mxu0 0.0
  %1687 = vmatmul.mubr.f32.gmra.mrb[0].mxu0 %v888
  %v1688 = vpop.f32.mrb[0].mxu0
  %v1689 = vadd.f32 0.0, %v1688
  %v1690 = vpop.f32.mrb[0].mxu0
  %1691 = vmatprep.mubr.f32.mxu0 0.0
  %1692 = vmatmul.mubr.f32.gmra.mrb[0].mxu0 %v891
  %v1693 = vpop.f32.mrb[0].mxu0
  %v1694 = vadd.f32 0.0, %v1693
  %v1695 = vpop.f32.mrb[0].mxu0
  %1696 = vmatprep.mubr.f32.mxu0 0.0
  %1697 = vmatmul.mubr.f32.gmra.mrb[0].mxu0 %v894
  %v1698 = vpop.f32.mrb[0].mxu0
  %v1699 = vadd.f32 0.0, %v1698
  %v1700 = vpop.f32.mrb[0].mxu0
  %1701 = vmatprep.mubr.f32.mxu0 0.0
  %1702 = vmatmul.mubr.f32.gmra.mrb[0].mxu0 %v897
  %v1703 = vpop.f32.mrb[0].mxu0
  %v1704 = vadd.f32 0.0, %v1703
  %v1705 = vpop.f32.mrb[0].mxu0
  %1706 = vmatprep.mubr.f32.mxu0 0.0
  %1707 = vmatmul.mubr.f32.gmra.mrb[0].mxu0 %v900
  %v1708 = vpop.f32.mrb[0].mxu0
  %v1709 = vadd.f32 0.0, %v1708
  %v1710 = vpop.f32.mrb[0].mxu0
  %1711 = vmatprep.mubr.f32.mxu0 0.0
  %1712 = vmatmul.mubr.f32.gmra.mrb[0].mxu0 %v903
  %v1713 = vpop.f32.mrb[0].mxu0
  %v1714 = vadd.f32 0.0, %v1713
  %v1715 = vpop.f32.mrb[0].mxu0
  %1716 = vmatprep.mubr.f32.mxu0 0.0
  %1717 = vmatmul.mubr.f32.gmra.mrb[0].mxu0 %v906
  %v1718 = vpop.f32.mrb[0].mxu0
  %v1719 = vadd.f32 0.0, %v1718
  %v1720 = vpop.f32.mrb[0].mxu0
  %1721 = vmatprep.mubr.f32.mxu0 0.0
  %1722 = vmatmul.mubr.f32.gmra.mrb[0].mxu0 %v909
  %v1723 = vpop.f32.mrb[0].mxu0
  %v1724 = vadd.f32 0.0, %v1723
  %v1725 = vpop.f32.mrb[0].mxu0
  %1726 = vmatprep.mubr.f32.mxu0 0.0
  %1727 = vmatmul.mubr.f32.gmra.mrb[0].mxu0 %v912
  %v1728 = vpop.f32.mrb[0].mxu0
  %v1729 = vadd.f32 0.0, %v1728
  %v1730 = vpop.f32.mrb[0].mxu0
  %1731 = vmatprep.mubr.f32.mxu0 0.0
  %1732 = vmatmul.mubr.f32.gmra.mrb[0].mxu0 %v915
  %v1733 = vpop.f32.mrb[0].mxu0
  %v1734 = vadd.f32 0.0, %v1733
  %v1735 = vpop.f32.mrb[0].mxu0
  %1736 = vmatprep.mubr.f32.mxu0 0.0
  %1737 = vmatmul.mubr.f32.gmra.mrb[0].mxu0 %v918
  %v1738 = vpop.f32.mrb[0].mxu0
  %v1739 = vadd.f32 0.0, %v1738
  %v1740 = vpop.f32.mrb[0].mxu0
  %1741 = vmatprep.mubr.f32.mxu0 0.0
  %1742 = vmatmul.mubr.f32.gmra.mrb[0].mxu0 %v921
  %v1743 = vpop.f32.mrb[0].mxu0
  %v1744 = vadd.f32 0.0, %v1743
  %v1745 = vpop.f32.mrb[0].mxu0
  %1746 = vmatprep.mubr.f32.mxu0 0.0
  %1747 = vmatmul.mubr.f32.gmra.mrb[0].mxu0 %v924
  %v1748 = vpop.f32.mrb[0].mxu0
  %v1749 = vadd.f32 0.0, %v1748
  %v1750 = vpop.f32.mrb[0].mxu0
  %1751 = vmatprep.mubr.f32.mxu0 0.0
  %1752 = vmatmul.mubr.f32.gmra.mrb[0].mxu0 %v927
  %v1753 = vpop.f32.mrb[0].mxu0
  %v1754 = vadd.f32 0.0, %v1753
  %v1755 = vpop.f32.mrb[0].mxu0
  %1756 = vmatprep.mubr.f32.mxu0 0.0
  %1757 = vmatmul.mubr.f32.gmra.mrb[0].mxu0 %v930
  %v1758 = vpop.f32.mrb[0].mxu0
  %v1759 = vadd.f32 0.0, %v1758
  %v1760 = vpop.f32.mrb[0].mxu0
  %1761 = vmatprep.mubr.f32.mxu0 0.0
  %1762 = vmatmul.mubr.f32.gmra.mrb[0].mxu0 %v933
  %v1763 = vpop.f32.mrb[0].mxu0
  %v1764 = vadd.f32 0.0, %v1763
  %v1765 = vpop.f32.mrb[0].mxu0
  %1766 = vmatprep.mubr.f32.mxu0 0.0
  %1767 = vmatmul.mubr.f32.gmra.mrb[0].mxu0 %v936
  %v1768 = vpop.f32.mrb[0].mxu0
  %v1769 = vadd.f32 0.0, %v1768
  %v1770 = vpop.f32.mrb[0].mxu0
  %1771 = vmatprep.mubr.f32.mxu0 0.0
  %1772 = vmatmul.mubr.f32.gmra.mrb[0].mxu0 %v939
  %v1773 = vpop.f32.mrb[0].mxu0
  %v1774 = vadd.f32 0.0, %v1773
  %v1775 = vpop.f32.mrb[0].mxu0
  %1776 = vdwg.mxu0
  %1777 = vst.msk [vmem:[%s8] sm:$0xff] %vm748, %v1459
  %1778 = vst.msk [vmem:[%s8 + $0x8] sm:$0xff] %vm748, %v1464
  %1779 = vst.msk [vmem:[%s8 + $0x10] sm:$0xff] %vm748, %v1469
  %1780 = vst.msk [vmem:[%s8 + $0x18] sm:$0xff] %vm748, %v1474
  %1781 = vst.msk [vmem:[%s8 + $0x20] sm:$0xff] %vm748, %v1479
  %1782 = vst.msk [vmem:[%s8 + $0x28] sm:$0xff] %vm748, %v1484
  %1783 = vst.msk [vmem:[%s8 + $0x30] sm:$0xff] %vm748, %v1489
  %1784 = vst.msk [vmem:[%s8 + $0x38] sm:$0xff] %vm748, %v1494
  %1785 = vst.msk [vmem:[%s8 + $0x40] sm:$0xff] %vm748, %v1499
  %1786 = vst.msk [vmem:[%s8 + $0x48] sm:$0xff] %vm748, %v1504
  %1787 = vst.msk [vmem:[%s8 + $0x50] sm:$0xff] %vm748, %v1509
  %1788 = vst.msk [vmem:[%s8 + $0x58] sm:$0xff] %vm748, %v1514
  %1789 = vst.msk [vmem:[%s8 + $0x60] sm:$0xff] %vm748, %v1519
  %1790 = vst.msk [vmem:[%s8 + $0x68] sm:$0xff] %vm748, %v1524
  %1791 = vst.msk [vmem:[%s8 + $0x70] sm:$0xff] %vm748, %v1529
  %1792 = vst.msk [vmem:[%s8 + $0x78] sm:$0xff] %vm748, %v1534
  %1793 = vst.msk [vmem:[%s8 + $0x80] sm:$0xff] %vm748, %v1539
  %1794 = vst.msk [vmem:[%s8 + $0x88] sm:$0xff] %vm748, %v1544
  %1795 = vst.msk [vmem:[%s8 + $0x90] sm:$0xff] %vm748, %v1549
  %1796 = vst.msk [vmem:[%s8 + $0x98] sm:$0xff] %vm748, %v1554
  %1797 = vst.msk [vmem:[%s8 + $0xa0] sm:$0xff] %vm748, %v1559
  %1798 = vst.msk [vmem:[%s8 + $0xa8] sm:$0xff] %vm748, %v1564
  %1799 = vst.msk [vmem:[%s8 + $0xb0] sm:$0xff] %vm748, %v1569
  %1800 = vst.msk [vmem:[%s8 + $0xb8] sm:$0xff] %vm748, %v1574
  %1801 = vst.msk [vmem:[%s8 + $0xc0] sm:$0xff] %vm748, %v1579
  %1802 = vst.msk [vmem:[%s8 + $0xc8] sm:$0xff] %vm748, %v1584
  %1803 = vst.msk [vmem:[%s8 + $0xd0] sm:$0xff] %vm748, %v1589
  %1804 = vst.msk [vmem:[%s8 + $0xd8] sm:$0xff] %vm748, %v1594
  %1805 = vst.msk [vmem:[%s8 + $0xe0] sm:$0xff] %vm748, %v1599
  %1806 = vst.msk [vmem:[%s8 + $0xe8] sm:$0xff] %vm748, %v1604
  %1807 = vst.msk [vmem:[%s8 + $0xf0] sm:$0xff] %vm748, %v1609
  %1808 = vst.msk [vmem:[%s8 + $0xf8] sm:$0xff] %vm748, %v1614
  %1809 = vst.msk [vmem:[%s8 + $0x100] sm:$0xff] %vm748, %v1619
  %1810 = vst.msk [vmem:[%s8 + $0x108] sm:$0xff] %vm748, %v1624
  %1811 = vst.msk [vmem:[%s8 + $0x110] sm:$0xff] %vm748, %v1629
  %1812 = vst.msk [vmem:[%s8 + $0x118] sm:$0xff] %vm748, %v1634
  %1813 = vst.msk [vmem:[%s8 + $0x120] sm:$0xff] %vm748, %v1639
  %1814 = vst.msk [vmem:[%s8 + $0x128] sm:$0xff] %vm748, %v1644
  %1815 = vst.msk [vmem:[%s8 + $0x130] sm:$0xff] %vm748, %v1649
  %1816 = vst.msk [vmem:[%s8 + $0x138] sm:$0xff] %vm748, %v1654
  %1817 = vst.msk [vmem:[%s8 + $0x140] sm:$0xff] %vm748, %v1659
  %1818 = vst.msk [vmem:[%s8 + $0x148] sm:$0xff] %vm748, %v1664
  %1819 = vst.msk [vmem:[%s8 + $0x150] sm:$0xff] %vm748, %v1669
  %1820 = vst.msk [vmem:[%s8 + $0x158] sm:$0xff] %vm748, %v1674
  %1821 = vst.msk [vmem:[%s8 + $0x160] sm:$0xff] %vm748, %v1679
  %1822 = vst.msk [vmem:[%s8 + $0x168] sm:$0xff] %vm748, %v1684
  %1823 = vst.msk [vmem:[%s8 + $0x170] sm:$0xff] %vm748, %v1689
  %1824 = vst.msk [vmem:[%s8 + $0x178] sm:$0xff] %vm748, %v1694
  %1825 = vst.msk [vmem:[%s8 + $0x180] sm:$0xff] %vm748, %v1699
  %1826 = vst.msk [vmem:[%s8 + $0x188] sm:$0xff] %vm748, %v1704
  %1827 = vst.msk [vmem:[%s8 + $0x190] sm:$0xff] %vm748, %v1709
  %1828 = vst.msk [vmem:[%s8 + $0x198] sm:$0xff] %vm748, %v1714
  %1829 = vst.msk [vmem:[%s8 + $0x1a0] sm:$0xff] %vm748, %v1719
  %1830 = vst.msk [vmem:[%s8 + $0x1a8] sm:$0xff] %vm748, %v1724
  %1831 = vst.msk [vmem:[%s8 + $0x1b0] sm:$0xff] %vm748, %v1729
  %1832 = vst.msk [vmem:[%s8 + $0x1b8] sm:$0xff] %vm748, %v1734
  %1833 = vst.msk [vmem:[%s8 + $0x1c0] sm:$0xff] %vm748, %v1739
  %1834 = vst.msk [vmem:[%s8 + $0x1c8] sm:$0xff] %vm748, %v1744
  %1835 = vst.msk [vmem:[%s8 + $0x1d0] sm:$0xff] %vm748, %v1749
  %1836 = vst.msk [vmem:[%s8 + $0x1d8] sm:$0xff] %vm748, %v1754
  %1837 = vst.msk [vmem:[%s8 + $0x1e0] sm:$0xff] %vm748, %v1759
  %1838 = vst.msk [vmem:[%s8 + $0x1e8] sm:$0xff] %vm748, %v1764
  %1839 = vst.msk [vmem:[%s8 + $0x1f0] sm:$0xff] %vm748, %v1769
  %1840 = vst.msk [vmem:[%s8 + $0x1f8] sm:$0xff] %vm748, %v1774
  %v1841 = vld [vmem:[%s1] sm:$0xff]
  %v1842 = vld [vmem:[%s1 + $0x8] sm:$0xff]
  %v1843 = vld [vmem:[%s1 + $0x10] sm:$0xff]
  %v1844 = vld [vmem:[%s1 + $0x18] sm:$0xff]
  %v1845 = vld [vmem:[%s1 + $0x20] sm:$0xff]
  %v1846 = vld [vmem:[%s1 + $0x28] sm:$0xff]
  %v1847 = vld [vmem:[%s1 + $0x30] sm:$0xff]
  %v1848 = vld [vmem:[%s1 + $0x38] sm:$0xff]
  %v1849 = vld [vmem:[%s1 + $0x40] sm:$0xff]
  %v1850 = vld [vmem:[%s1 + $0x48] sm:$0xff]
  %v1851 = vld [vmem:[%s1 + $0x50] sm:$0xff]
  %v1852 = vld [vmem:[%s1 + $0x58] sm:$0xff]
  %v1853 = vld [vmem:[%s1 + $0x60] sm:$0xff]
  %v1854 = vld [vmem:[%s1 + $0x68] sm:$0xff]
  %v1855 = vld [vmem:[%s1 + $0x70] sm:$0xff]
  %v1856 = vld [vmem:[%s1 + $0x78] sm:$0xff]
  %v1857 = vld [vmem:[%s1 + $0x80] sm:$0xff]
  %v1858 = vld [vmem:[%s1 + $0x88] sm:$0xff]
  %v1859 = vld [vmem:[%s1 + $0x90] sm:$0xff]
  %v1860 = vld [vmem:[%s1 + $0x98] sm:$0xff]
  %v1861 = vld [vmem:[%s1 + $0xa0] sm:$0xff]
  %v1862 = vld [vmem:[%s1 + $0xa8] sm:$0xff]
  %v1863 = vld [vmem:[%s1 + $0xb0] sm:$0xff]
  %v1864 = vld [vmem:[%s1 + $0xb8] sm:$0xff]
  %v1865 = vld [vmem:[%s1 + $0xc0] sm:$0xff]
  %v1866 = vld [vmem:[%s1 + $0xc8] sm:$0xff]
  %v1867 = vld [vmem:[%s1 + $0xd0] sm:$0xff]
  %v1868 = vld [vmem:[%s1 + $0xd8] sm:$0xff]
  %v1869 = vld [vmem:[%s1 + $0xe0] sm:$0xff]
  %v1870 = vld [vmem:[%s1 + $0xe8] sm:$0xff]
  %v1871 = vld [vmem:[%s1 + $0xf0] sm:$0xff]
  %v1872 = vld [vmem:[%s1 + $0xf8] sm:$0xff]
  %v1873 = vld [vmem:[%s1 + $0x100] sm:$0xff]
  %v1874 = vld [vmem:[%s1 + $0x108] sm:$0xff]
  %v1875 = vld [vmem:[%s1 + $0x110] sm:$0xff]
  %v1876 = vld [vmem:[%s1 + $0x118] sm:$0xff]
  %v1877 = vld [vmem:[%s1 + $0x120] sm:$0xff]
  %v1878 = vld [vmem:[%s1 + $0x128] sm:$0xff]
  %v1879 = vld [vmem:[%s1 + $0x130] sm:$0xff]
  %v1880 = vld [vmem:[%s1 + $0x138] sm:$0xff]
  %v1881 = vld [vmem:[%s1 + $0x140] sm:$0xff]
  %v1882 = vld [vmem:[%s1 + $0x148] sm:$0xff]
  %v1883 = vld [vmem:[%s1 + $0x150] sm:$0xff]
  %v1884 = vld [vmem:[%s1 + $0x158] sm:$0xff]
  %v1885 = vld [vmem:[%s1 + $0x160] sm:$0xff]
  %v1886 = vld [vmem:[%s1 + $0x168] sm:$0xff]
  %v1887 = vld [vmem:[%s1 + $0x170] sm:$0xff]
  %v1888 = vld [vmem:[%s1 + $0x178] sm:$0xff]
  %v1889 = vld [vmem:[%s1 + $0x180] sm:$0xff]
  %v1890 = vld [vmem:[%s1 + $0x188] sm:$0xff]
  %v1891 = vld [vmem:[%s1 + $0x190] sm:$0xff]
  %v1892 = vld [vmem:[%s1 + $0x198] sm:$0xff]
  %v1893 = vld [vmem:[%s1 + $0x1a0] sm:$0xff]
  %v1894 = vld [vmem:[%s1 + $0x1a8] sm:$0xff]
  %v1895 = vld [vmem:[%s1 + $0x1b0] sm:$0xff]
  %v1896 = vld [vmem:[%s1 + $0x1b8] sm:$0xff]
  %v1897 = vld [vmem:[%s1 + $0x1c0] sm:$0xff]
  %v1898 = vld [vmem:[%s1 + $0x1c8] sm:$0xff]
  %v1899 = vld [vmem:[%s1 + $0x1d0] sm:$0xff]
  %v1900 = vld [vmem:[%s1 + $0x1d8] sm:$0xff]
  %v1901 = vld [vmem:[%s1 + $0x1e0] sm:$0xff]
  %v1902 = vld [vmem:[%s1 + $0x1e8] sm:$0xff]
  %v1903 = vld [vmem:[%s1 + $0x1f0] sm:$0xff]
  %v1904 = vld [vmem:[%s1 + $0x1f8] sm:$0xff]
  %v1905 = vld [vmem:[%s6] sm:$0xff]
  %v1906 = vld [vmem:[%s6 + $0x8] sm:$0xff]
  %v1908 = vsel %vm748, %v1841, 0
  %v1911 = vsel %vm748, %v1842, 0
  %v1914 = vsel %vm748, %v1843, 0
  %v1917 = vsel %vm748, %v1844, 0
  %v1920 = vsel %vm748, %v1845, 0
  %v1923 = vsel %vm748, %v1846, 0
  %v1926 = vsel %vm748, %v1847, 0
  %v1929 = vsel %vm748, %v1848, 0
  %v1932 = vsel %vm748, %v1849, 0
  %v1935 = vsel %vm748, %v1850, 0
  %v1938 = vsel %vm748, %v1851, 0
  %v1941 = vsel %vm748, %v1852, 0
  %v1944 = vsel %vm748, %v1853, 0
  %v1947 = vsel %vm748, %v1854, 0
  %v1950 = vsel %vm748, %v1855, 0
  %v1953 = vsel %vm748, %v1856, 0
  %v1956 = vsel %vm748, %v1857, 0
  %v1959 = vsel %vm748, %v1858, 0
  %v1962 = vsel %vm748, %v1859, 0
  %v1965 = vsel %vm748, %v1860, 0
  %v1968 = vsel %vm748, %v1861, 0
  %v1971 = vsel %vm748, %v1862, 0
  %v1974 = vsel %vm748, %v1863, 0
  %v1977 = vsel %vm748, %v1864, 0
  %v1980 = vsel %vm748, %v1865, 0
  %v1983 = vsel %vm748, %v1866, 0
  %v1986 = vsel %vm748, %v1867, 0
  %v1989 = vsel %vm748, %v1868, 0
  %v1992 = vsel %vm748, %v1869, 0
  %v1995 = vsel %vm748, %v1870, 0
  %v1998 = vsel %vm748, %v1871, 0
  %v2001 = vsel %vm748, %v1872, 0
  %v2004 = vsel %vm748, %v1873, 0
  %v2007 = vsel %vm748, %v1874, 0
  %v2010 = vsel %vm748, %v1875, 0
  %v2013 = vsel %vm748, %v1876, 0
  %v2016 = vsel %vm748, %v1877, 0
  %v2019 = vsel %vm748, %v1878, 0
  %v2022 = vsel %vm748, %v1879, 0
  %v2025 = vsel %vm748, %v1880, 0
  %v2028 = vsel %vm748, %v1881, 0
  %v2031 = vsel %vm748, %v1882, 0
  %v2034 = vsel %vm748, %v1883, 0
  %v2037 = vsel %vm748, %v1884, 0
  %v2040 = vsel %vm748, %v1885, 0
  %v2043 = vsel %vm748, %v1886, 0
  %v2046 = vsel %vm748, %v1887, 0
  %v2049 = vsel %vm748, %v1888, 0
  %v2052 = vsel %vm748, %v1889, 0
  %v2055 = vsel %vm748, %v1890, 0
  %v2058 = vsel %vm748, %v1891, 0
  %v2061 = vsel %vm748, %v1892, 0
  %v2064 = vsel %vm748, %v1893, 0
  %v2067 = vsel %vm748, %v1894, 0
  %v2070 = vsel %vm748, %v1895, 0
  %v2073 = vsel %vm748, %v1896, 0
  %v2076 = vsel %vm748, %v1897, 0
  %v2079 = vsel %vm748, %v1898, 0
  %v2082 = vsel %vm748, %v1899, 0
  %v2085 = vsel %vm748, %v1900, 0
  %v2088 = vsel %vm748, %v1901, 0
  %v2091 = vsel %vm748, %v1902, 0
  %v2094 = vsel %vm748, %v1903, 0
  %v2097 = vsel %vm748, %v1904, 0
  %2099 = vmatprep.subr.mxu0 0.0
  %2100 = vmatpush1.msra.mxu0 %v1905
  %2101 = vmatprep.subr.mxu0 0.0
  %2102 = vmatpush1.msra.mxu0 %v1906
  %2103 = vmatprep.subr.mxu0 0.0
  %2104 = vmatpush1.msra.mxu0 0.0
  %2105 = vmatprep.subr.mxu0 0.0
  %2106 = vmatpush1.msra.mxu0 0.0
  %2107 = vmatprep.subr.mxu0 0.0
  %2108 = vmatpush1.msra.mxu0 0.0
  %2109 = vmatprep.subr.mxu0 0.0
  %2110 = vmatpush1.msra.mxu0 0.0
  %2111 = vmatprep.subr.mxu0 0.0
  %2112 = vmatpush1.msra.mxu0 0.0
  %2113 = vmatprep.subr.mxu0 0.0
  %2114 = vmatpush1.msra.mxu0 0.0
  %2115 = vmatprep.subr.mxu0 0.0
  %2116 = vmatpush1.msra.mxu0 0.0
  %2117 = vmatprep.subr.mxu0 0.0
  %2118 = vmatpush1.msra.mxu0 0.0
  %2119 = vmatprep.subr.mxu0 0.0
  %2120 = vmatpush1.msra.mxu0 0.0
  %2121 = vmatprep.subr.mxu0 0.0
  %2122 = vmatpush1.msra.mxu0 0.0
  %2123 = vmatprep.subr.mxu0 0.0
  %2124 = vmatpush1.msra.mxu0 0.0
  %2125 = vmatprep.subr.mxu0 0.0
  %2126 = vmatpush1.msra.mxu0 0.0
  %2127 = vmatprep.subr.mxu0 0.0
  %2128 = vmatpush1.msra.mxu0 0.0
  %2129 = vmatprep.subr.mxu0 0.0
  %2130 = vmatpush1.msra.mxu0 0.0
  %2131 = vmatprep.subr.mxu0 0.0
  %2132 = vmatpush1.msra.mxu0 0.0
  %2133 = vmatprep.subr.mxu0 0.0
  %2134 = vmatpush1.msra.mxu0 0.0
  %2135 = vmatprep.subr.mxu0 0.0
  %2136 = vmatpush1.msra.mxu0 0.0
  %2137 = vmatprep.subr.mxu0 0.0
  %2138 = vmatpush1.msra.mxu0 0.0
  %2139 = vmatprep.subr.mxu0 0.0
  %2140 = vmatpush1.msra.mxu0 0.0
  %2141 = vmatprep.subr.mxu0 0.0
  %2142 = vmatpush1.msra.mxu0 0.0
  %2143 = vmatprep.subr.mxu0 0.0
  %2144 = vmatpush1.msra.mxu0 0.0
  %2145 = vmatprep.subr.mxu0 0.0
  %2146 = vmatpush1.msra.mxu0 0.0
  %2147 = vmatprep.subr.mxu0 0.0
  %2148 = vmatpush1.msra.mxu0 0.0
  %2149 = vmatprep.subr.mxu0 0.0
  %2150 = vmatpush1.msra.mxu0 0.0
  %2151 = vmatprep.subr.mxu0 0.0
  %2152 = vmatpush1.msra.mxu0 0.0
  %2153 = vmatprep.subr.mxu0 0.0
  %2154 = vmatpush1.msra.mxu0 0.0
  %2155 = vmatprep.subr.mxu0 0.0
  %2156 = vmatpush1.msra.mxu0 0.0
  %2157 = vmatprep.subr.mxu0 0.0
  %2158 = vmatpush1.msra.mxu0 0.0
  %2159 = vmatprep.subr.mxu0 0.0
  %2160 = vmatpush1.msra.mxu0 0.0
  %2161 = vmatprep.subr.mxu0 0.0
  %2162 = vmatpush1.msra.mxu0 0.0
  %2163 = vmatprep.mubr.f32.mxu0 0.0
  %2164 = vmatmul.mubr.f32.gmra.mrb[0].mxu0 %v1908
  %v2165 = vpop.f32.mrb[0].mxu0
  %v2166 = vadd.f32 0.0, %v2165
  %v2167 = vpop.f32.mrb[0].mxu0
  %2168 = vmatprep.mubr.f32.mxu0 0.0
  %2169 = vmatmul.mubr.f32.gmra.mrb[0].mxu0 %v1911
  %v2170 = vpop.f32.mrb[0].mxu0
  %v2171 = vadd.f32 0.0, %v2170
  %v2172 = vpop.f32.mrb[0].mxu0
  %2173 = vmatprep.mubr.f32.mxu0 0.0
  %2174 = vmatmul.mubr.f32.gmra.mrb[0].mxu0 %v1914
  %v2175 = vpop.f32.mrb[0].mxu0
  %v2176 = vadd.f32 0.0, %v2175
  %v2177 = vpop.f32.mrb[0].mxu0
  %2178 = vmatprep.mubr.f32.mxu0 0.0
  %2179 = vmatmul.mubr.f32.gmra.mrb[0].mxu0 %v1917
  %v2180 = vpop.f32.mrb[0].mxu0
  %v2181 = vadd.f32 0.0, %v2180
  %v2182 = vpop.f32.mrb[0].mxu0
  %2183 = vmatprep.mubr.f32.mxu0 0.0
  %2184 = vmatmul.mubr.f32.gmra.mrb[0].mxu0 %v1920
  %v2185 = vpop.f32.mrb[0].mxu0
  %v2186 = vadd.f32 0.0, %v2185
  %v2187 = vpop.f32.mrb[0].mxu0
  %2188 = vmatprep.mubr.f32.mxu0 0.0
  %2189 = vmatmul.mubr.f32.gmra.mrb[0].mxu0 %v1923
  %v2190 = vpop.f32.mrb[0].mxu0
  %v2191 = vadd.f32 0.0, %v2190
  %v2192 = vpop.f32.mrb[0].mxu0
  %2193 = vmatprep.mubr.f32.mxu0 0.0
  %2194 = vmatmul.mubr.f32.gmra.mrb[0].mxu0 %v1926
  %v2195 = vpop.f32.mrb[0].mxu0
  %v2196 = vadd.f32 0.0, %v2195
  %v2197 = vpop.f32.mrb[0].mxu0
  %2198 = vmatprep.mubr.f32.mxu0 0.0
  %2199 = vmatmul.mubr.f32.gmra.mrb[0].mxu0 %v1929
  %v2200 = vpop.f32.mrb[0].mxu0
  %v2201 = vadd.f32 0.0, %v2200
  %v2202 = vpop.f32.mrb[0].mxu0
  %2203 = vmatprep.mubr.f32.mxu0 0.0
  %2204 = vmatmul.mubr.f32.gmra.mrb[0].mxu0 %v1932
  %v2205 = vpop.f32.mrb[0].mxu0
  %v2206 = vadd.f32 0.0, %v2205
  %v2207 = vpop.f32.mrb[0].mxu0
  %2208 = vmatprep.mubr.f32.mxu0 0.0
  %2209 = vmatmul.mubr.f32.gmra.mrb[0].mxu0 %v1935
  %v2210 = vpop.f32.mrb[0].mxu0
  %v2211 = vadd.f32 0.0, %v2210
  %v2212 = vpop.f32.mrb[0].mxu0
  %2213 = vmatprep.mubr.f32.mxu0 0.0
  %2214 = vmatmul.mubr.f32.gmra.mrb[0].mxu0 %v1938
  %v2215 = vpop.f32.mrb[0].mxu0
  %v2216 = vadd.f32 0.0, %v2215
  %v2217 = vpop.f32.mrb[0].mxu0
  %2218 = vmatprep.mubr.f32.mxu0 0.0
  %2219 = vmatmul.mubr.f32.gmra.mrb[0].mxu0 %v1941
  %v2220 = vpop.f32.mrb[0].mxu0
  %v2221 = vadd.f32 0.0, %v2220
  %v2222 = vpop.f32.mrb[0].mxu0
  %2223 = vmatprep.mubr.f32.mxu0 0.0
  %2224 = vmatmul.mubr.f32.gmra.mrb[0].mxu0 %v1944
  %v2225 = vpop.f32.mrb[0].mxu0
  %v2226 = vadd.f32 0.0, %v2225
  %v2227 = vpop.f32.mrb[0].mxu0
  %2228 = vmatprep.mubr.f32.mxu0 0.0
  %2229 = vmatmul.mubr.f32.gmra.mrb[0].mxu0 %v1947
  %v2230 = vpop.f32.mrb[0].mxu0
  %v2231 = vadd.f32 0.0, %v2230
  %v2232 = vpop.f32.mrb[0].mxu0
  %2233 = vmatprep.mubr.f32.mxu0 0.0
  %2234 = vmatmul.mubr.f32.gmra.mrb[0].mxu0 %v1950
  %v2235 = vpop.f32.mrb[0].mxu0
  %v2236 = vadd.f32 0.0, %v2235
  %v2237 = vpop.f32.mrb[0].mxu0
  %2238 = vmatprep.mubr.f32.mxu0 0.0
  %2239 = vmatmul.mubr.f32.gmra.mrb[0].mxu0 %v1953
  %v2240 = vpop.f32.mrb[0].mxu0
  %v2241 = vadd.f32 0.0, %v2240
  %v2242 = vpop.f32.mrb[0].mxu0
  %2243 = vmatprep.mubr.f32.mxu0 0.0
  %2244 = vmatmul.mubr.f32.gmra.mrb[0].mxu0 %v1956
  %v2245 = vpop.f32.mrb[0].mxu0
  %v2246 = vadd.f32 0.0, %v2245
  %v2247 = vpop.f32.mrb[0].mxu0
  %2248 = vmatprep.mubr.f32.mxu0 0.0
  %2249 = vmatmul.mubr.f32.gmra.mrb[0].mxu0 %v1959
  %v2250 = vpop.f32.mrb[0].mxu0
  %v2251 = vadd.f32 0.0, %v2250
  %v2252 = vpop.f32.mrb[0].mxu0
  %2253 = vmatprep.mubr.f32.mxu0 0.0
  %2254 = vmatmul.mubr.f32.gmra.mrb[0].mxu0 %v1962
  %v2255 = vpop.f32.mrb[0].mxu0
  %v2256 = vadd.f32 0.0, %v2255
  %v2257 = vpop.f32.mrb[0].mxu0
  %2258 = vmatprep.mubr.f32.mxu0 0.0
  %2259 = vmatmul.mubr.f32.gmra.mrb[0].mxu0 %v1965
  %v2260 = vpop.f32.mrb[0].mxu0
  %v2261 = vadd.f32 0.0, %v2260
  %v2262 = vpop.f32.mrb[0].mxu0
  %2263 = vmatprep.mubr.f32.mxu0 0.0
  %2264 = vmatmul.mubr.f32.gmra.mrb[0].mxu0 %v1968
  %v2265 = vpop.f32.mrb[0].mxu0
  %v2266 = vadd.f32 0.0, %v2265
  %v2267 = vpop.f32.mrb[0].mxu0
  %2268 = vmatprep.mubr.f32.mxu0 0.0
  %2269 = vmatmul.mubr.f32.gmra.mrb[0].mxu0 %v1971
  %v2270 = vpop.f32.mrb[0].mxu0
  %v2271 = vadd.f32 0.0, %v2270
  %v2272 = vpop.f32.mrb[0].mxu0
  %2273 = vmatprep.mubr.f32.mxu0 0.0
  %2274 = vmatmul.mubr.f32.gmra.mrb[0].mxu0 %v1974
  %v2275 = vpop.f32.mrb[0].mxu0
  %v2276 = vadd.f32 0.0, %v2275
  %v2277 = vpop.f32.mrb[0].mxu0
  %2278 = vmatprep.mubr.f32.mxu0 0.0
  %2279 = vmatmul.mubr.f32.gmra.mrb[0].mxu0 %v1977
  %v2280 = vpop.f32.mrb[0].mxu0
  %v2281 = vadd.f32 0.0, %v2280
  %v2282 = vpop.f32.mrb[0].mxu0
  %2283 = vmatprep.mubr.f32.mxu0 0.0
  %2284 = vmatmul.mubr.f32.gmra.mrb[0].mxu0 %v1980
  %v2285 = vpop.f32.mrb[0].mxu0
  %v2286 = vadd.f32 0.0, %v2285
  %v2287 = vpop.f32.mrb[0].mxu0
  %2288 = vmatprep.mubr.f32.mxu0 0.0
  %2289 = vmatmul.mubr.f32.gmra.mrb[0].mxu0 %v1983
  %v2290 = vpop.f32.mrb[0].mxu0
  %v2291 = vadd.f32 0.0, %v2290
  %v2292 = vpop.f32.mrb[0].mxu0
  %2293 = vmatprep.mubr.f32.mxu0 0.0
  %2294 = vmatmul.mubr.f32.gmra.mrb[0].mxu0 %v1986
  %v2295 = vpop.f32.mrb[0].mxu0
  %v2296 = vadd.f32 0.0, %v2295
  %v2297 = vpop.f32.mrb[0].mxu0
  %2298 = vmatprep.mubr.f32.mxu0 0.0
  %2299 = vmatmul.mubr.f32.gmra.mrb[0].mxu0 %v1989
  %v2300 = vpop.f32.mrb[0].mxu0
  %v2301 = vadd.f32 0.0, %v2300
  %v2302 = vpop.f32.mrb[0].mxu0
  %2303 = vmatprep.mubr.f32.mxu0 0.0
  %2304 = vmatmul.mubr.f32.gmra.mrb[0].mxu0 %v1992
  %v2305 = vpop.f32.mrb[0].mxu0
  %v2306 = vadd.f32 0.0, %v2305
  %v2307 = vpop.f32.mrb[0].mxu0
  %2308 = vmatprep.mubr.f32.mxu0 0.0
  %2309 = vmatmul.mubr.f32.gmra.mrb[0].mxu0 %v1995
  %v2310 = vpop.f32.mrb[0].mxu0
  %v2311 = vadd.f32 0.0, %v2310
  %v2312 = vpop.f32.mrb[0].mxu0
  %2313 = vmatprep.mubr.f32.mxu0 0.0
  %2314 = vmatmul.mubr.f32.gmra.mrb[0].mxu0 %v1998
  %v2315 = vpop.f32.mrb[0].mxu0
  %v2316 = vadd.f32 0.0, %v2315
  %v2317 = vpop.f32.mrb[0].mxu0
  %2318 = vmatprep.mubr.f32.mxu0 0.0
  %2319 = vmatmul.mubr.f32.gmra.mrb[0].mxu0 %v2001
  %v2320 = vpop.f32.mrb[0].mxu0
  %v2321 = vadd.f32 0.0, %v2320
  %v2322 = vpop.f32.mrb[0].mxu0
  %2323 = vmatprep.mubr.f32.mxu0 0.0
  %2324 = vmatmul.mubr.f32.gmra.mrb[0].mxu0 %v2004
  %v2325 = vpop.f32.mrb[0].mxu0
  %v2326 = vadd.f32 0.0, %v2325
  %v2327 = vpop.f32.mrb[0].mxu0
  %2328 = vmatprep.mubr.f32.mxu0 0.0
  %2329 = vmatmul.mubr.f32.gmra.mrb[0].mxu0 %v2007
  %v2330 = vpop.f32.mrb[0].mxu0
  %v2331 = vadd.f32 0.0, %v2330
  %v2332 = vpop.f32.mrb[0].mxu0
  %2333 = vmatprep.mubr.f32.mxu0 0.0
  %2334 = vmatmul.mubr.f32.gmra.mrb[0].mxu0 %v2010
  %v2335 = vpop.f32.mrb[0].mxu0
  %v2336 = vadd.f32 0.0, %v2335
  %v2337 = vpop.f32.mrb[0].mxu0
  %2338 = vmatprep.mubr.f32.mxu0 0.0
  %2339 = vmatmul.mubr.f32.gmra.mrb[0].mxu0 %v2013
  %v2340 = vpop.f32.mrb[0].mxu0
  %v2341 = vadd.f32 0.0, %v2340
  %v2342 = vpop.f32.mrb[0].mxu0
  %2343 = vmatprep.mubr.f32.mxu0 0.0
  %2344 = vmatmul.mubr.f32.gmra.mrb[0].mxu0 %v2016
  %v2345 = vpop.f32.mrb[0].mxu0
  %v2346 = vadd.f32 0.0, %v2345
  %v2347 = vpop.f32.mrb[0].mxu0
  %2348 = vmatprep.mubr.f32.mxu0 0.0
  %2349 = vmatmul.mubr.f32.gmra.mrb[0].mxu0 %v2019
  %v2350 = vpop.f32.mrb[0].mxu0
  %v2351 = vadd.f32 0.0, %v2350
  %v2352 = vpop.f32.mrb[0].mxu0
  %2353 = vmatprep.mubr.f32.mxu0 0.0
  %2354 = vmatmul.mubr.f32.gmra.mrb[0].mxu0 %v2022
  %v2355 = vpop.f32.mrb[0].mxu0
  %v2356 = vadd.f32 0.0, %v2355
  %v2357 = vpop.f32.mrb[0].mxu0
  %2358 = vmatprep.mubr.f32.mxu0 0.0
  %2359 = vmatmul.mubr.f32.gmra.mrb[0].mxu0 %v2025
  %v2360 = vpop.f32.mrb[0].mxu0
  %v2361 = vadd.f32 0.0, %v2360
  %v2362 = vpop.f32.mrb[0].mxu0
  %2363 = vmatprep.mubr.f32.mxu0 0.0
  %2364 = vmatmul.mubr.f32.gmra.mrb[0].mxu0 %v2028
  %v2365 = vpop.f32.mrb[0].mxu0
  %v2366 = vadd.f32 0.0, %v2365
  %v2367 = vpop.f32.mrb[0].mxu0
  %2368 = vmatprep.mubr.f32.mxu0 0.0
  %2369 = vmatmul.mubr.f32.gmra.mrb[0].mxu0 %v2031
  %v2370 = vpop.f32.mrb[0].mxu0
  %v2371 = vadd.f32 0.0, %v2370
  %v2372 = vpop.f32.mrb[0].mxu0
  %2373 = vmatprep.mubr.f32.mxu0 0.0
  %2374 = vmatmul.mubr.f32.gmra.mrb[0].mxu0 %v2034
  %v2375 = vpop.f32.mrb[0].mxu0
  %v2376 = vadd.f32 0.0, %v2375
  %v2377 = vpop.f32.mrb[0].mxu0
  %2378 = vmatprep.mubr.f32.mxu0 0.0
  %2379 = vmatmul.mubr.f32.gmra.mrb[0].mxu0 %v2037
  %v2380 = vpop.f32.mrb[0].mxu0
  %v2381 = vadd.f32 0.0, %v2380
  %v2382 = vpop.f32.mrb[0].mxu0
  %2383 = vmatprep.mubr.f32.mxu0 0.0
  %2384 = vmatmul.mubr.f32.gmra.mrb[0].mxu0 %v2040
  %v2385 = vpop.f32.mrb[0].mxu0
  %v2386 = vadd.f32 0.0, %v2385
  %v2387 = vpop.f32.mrb[0].mxu0
  %2388 = vmatprep.mubr.f32.mxu0 0.0
  %2389 = vmatmul.mubr.f32.gmra.mrb[0].mxu0 %v2043
  %v2390 = vpop.f32.mrb[0].mxu0
  %v2391 = vadd.f32 0.0, %v2390
  %v2392 = vpop.f32.mrb[0].mxu0
  %2393 = vmatprep.mubr.f32.mxu0 0.0
  %2394 = vmatmul.mubr.f32.gmra.mrb[0].mxu0 %v2046
  %v2395 = vpop.f32.mrb[0].mxu0
  %v2396 = vadd.f32 0.0, %v2395
  %v2397 = vpop.f32.mrb[0].mxu0
  %2398 = vmatprep.mubr.f32.mxu0 0.0
  %2399 = vmatmul.mubr.f32.gmra.mrb[0].mxu0 %v2049
  %v2400 = vpop.f32.mrb[0].mxu0
  %v2401 = vadd.f32 0.0, %v2400
  %v2402 = vpop.f32.mrb[0].mxu0
  %2403 = vmatprep.mubr.f32.mxu0 0.0
  %2404 = vmatmul.mubr.f32.gmra.mrb[0].mxu0 %v2052
  %v2405 = vpop.f32.mrb[0].mxu0
  %v2406 = vadd.f32 0.0, %v2405
  %v2407 = vpop.f32.mrb[0].mxu0
  %2408 = vmatprep.mubr.f32.mxu0 0.0
  %2409 = vmatmul.mubr.f32.gmra.mrb[0].mxu0 %v2055
  %v2410 = vpop.f32.mrb[0].mxu0
  %v2411 = vadd.f32 0.0, %v2410
  %v2412 = vpop.f32.mrb[0].mxu0
  %2413 = vmatprep.mubr.f32.mxu0 0.0
  %2414 = vmatmul.mubr.f32.gmra.mrb[0].mxu0 %v2058
  %v2415 = vpop.f32.mrb[0].mxu0
  %v2416 = vadd.f32 0.0, %v2415
  %v2417 = vpop.f32.mrb[0].mxu0
  %2418 = vmatprep.mubr.f32.mxu0 0.0
  %2419 = vmatmul.mubr.f32.gmra.mrb[0].mxu0 %v2061
  %v2420 = vpop.f32.mrb[0].mxu0
  %v2421 = vadd.f32 0.0, %v2420
  %v2422 = vpop.f32.mrb[0].mxu0
  %2423 = vmatprep.mubr.f32.mxu0 0.0
  %2424 = vmatmul.mubr.f32.gmra.mrb[0].mxu0 %v2064
  %v2425 = vpop.f32.mrb[0].mxu0
  %v2426 = vadd.f32 0.0, %v2425
  %v2427 = vpop.f32.mrb[0].mxu0
  %2428 = vmatprep.mubr.f32.mxu0 0.0
  %2429 = vmatmul.mubr.f32.gmra.mrb[0].mxu0 %v2067
  %v2430 = vpop.f32.mrb[0].mxu0
  %v2431 = vadd.f32 0.0, %v2430
  %v2432 = vpop.f32.mrb[0].mxu0
  %2433 = vmatprep.mubr.f32.mxu0 0.0
  %2434 = vmatmul.mubr.f32.gmra.mrb[0].mxu0 %v2070
  %v2435 = vpop.f32.mrb[0].mxu0
  %v2436 = vadd.f32 0.0, %v2435
  %v2437 = vpop.f32.mrb[0].mxu0
  %2438 = vmatprep.mubr.f32.mxu0 0.0
  %2439 = vmatmul.mubr.f32.gmra.mrb[0].mxu0 %v2073
  %v2440 = vpop.f32.mrb[0].mxu0
  %v2441 = vadd.f32 0.0, %v2440
  %v2442 = vpop.f32.mrb[0].mxu0
  %2443 = vmatprep.mubr.f32.mxu0 0.0
  %2444 = vmatmul.mubr.f32.gmra.mrb[0].mxu0 %v2076
  %v2445 = vpop.f32.mrb[0].mxu0
  %v2446 = vadd.f32 0.0, %v2445
  %v2447 = vpop.f32.mrb[0].mxu0
  %2448 = vmatprep.mubr.f32.mxu0 0.0
  %2449 = vmatmul.mubr.f32.gmra.mrb[0].mxu0 %v2079
  %v2450 = vpop.f32.mrb[0].mxu0
  %v2451 = vadd.f32 0.0, %v2450
  %v2452 = vpop.f32.mrb[0].mxu0
  %2453 = vmatprep.mubr.f32.mxu0 0.0
  %2454 = vmatmul.mubr.f32.gmra.mrb[0].mxu0 %v2082
  %v2455 = vpop.f32.mrb[0].mxu0
  %v2456 = vadd.f32 0.0, %v2455
  %v2457 = vpop.f32.mrb[0].mxu0
  %2458 = vmatprep.mubr.f32.mxu0 0.0
  %2459 = vmatmul.mubr.f32.gmra.mrb[0].mxu0 %v2085
  %v2460 = vpop.f32.mrb[0].mxu0
  %v2461 = vadd.f32 0.0, %v2460
  %v2462 = vpop.f32.mrb[0].mxu0
  %2463 = vmatprep.mubr.f32.mxu0 0.0
  %2464 = vmatmul.mubr.f32.gmra.mrb[0].mxu0 %v2088
  %v2465 = vpop.f32.mrb[0].mxu0
  %v2466 = vadd.f32 0.0, %v2465
  %v2467 = vpop.f32.mrb[0].mxu0
  %2468 = vmatprep.mubr.f32.mxu0 0.0
  %2469 = vmatmul.mubr.f32.gmra.mrb[0].mxu0 %v2091
  %v2470 = vpop.f32.mrb[0].mxu0
  %v2471 = vadd.f32 0.0, %v2470
  %v2472 = vpop.f32.mrb[0].mxu0
  %2473 = vmatprep.mubr.f32.mxu0 0.0
  %2474 = vmatmul.mubr.f32.gmra.mrb[0].mxu0 %v2094
  %v2475 = vpop.f32.mrb[0].mxu0
  %v2476 = vadd.f32 0.0, %v2475
  %v2477 = vpop.f32.mrb[0].mxu0
  %2478 = vmatprep.mubr.f32.mxu0 0.0
  %2479 = vmatmul.mubr.f32.gmra.mrb[0].mxu0 %v2097
  %v2480 = vpop.f32.mrb[0].mxu0
  %v2481 = vadd.f32 0.0, %v2480
  %v2482 = vpop.f32.mrb[0].mxu0
  %2483 = vdwg.mxu0
  %2484 = vst.msk [vmem:[%s9] sm:$0xff] %vm748, %v2166
  %2485 = vst.msk [vmem:[%s9 + $0x8] sm:$0xff] %vm748, %v2171
  %2486 = vst.msk [vmem:[%s9 + $0x10] sm:$0xff] %vm748, %v2176
  %2487 = vst.msk [vmem:[%s9 + $0x18] sm:$0xff] %vm748, %v2181
  %2488 = vst.msk [vmem:[%s9 + $0x20] sm:$0xff] %vm748, %v2186
  %2489 = vst.msk [vmem:[%s9 + $0x28] sm:$0xff] %vm748, %v2191
  %2490 = vst.msk [vmem:[%s9 + $0x30] sm:$0xff] %vm748, %v2196
  %2491 = vst.msk [vmem:[%s9 + $0x38] sm:$0xff] %vm748, %v2201
  %2492 = vst.msk [vmem:[%s9 + $0x40] sm:$0xff] %vm748, %v2206
  %2493 = vst.msk [vmem:[%s9 + $0x48] sm:$0xff] %vm748, %v2211
  %2494 = vst.msk [vmem:[%s9 + $0x50] sm:$0xff] %vm748, %v2216
  %2495 = vst.msk [vmem:[%s9 + $0x58] sm:$0xff] %vm748, %v2221
  %2496 = vst.msk [vmem:[%s9 + $0x60] sm:$0xff] %vm748, %v2226
  %2497 = vst.msk [vmem:[%s9 + $0x68] sm:$0xff] %vm748, %v2231
  %2498 = vst.msk [vmem:[%s9 + $0x70] sm:$0xff] %vm748, %v2236
  %2499 = vst.msk [vmem:[%s9 + $0x78] sm:$0xff] %vm748, %v2241
  %2500 = vst.msk [vmem:[%s9 + $0x80] sm:$0xff] %vm748, %v2246
  %2501 = vst.msk [vmem:[%s9 + $0x88] sm:$0xff] %vm748, %v2251
  %2502 = vst.msk [vmem:[%s9 + $0x90] sm:$0xff] %vm748, %v2256
  %2503 = vst.msk [vmem:[%s9 + $0x98] sm:$0xff] %vm748, %v2261
  %2504 = vst.msk [vmem:[%s9 + $0xa0] sm:$0xff] %vm748, %v2266
  %2505 = vst.msk [vmem:[%s9 + $0xa8] sm:$0xff] %vm748, %v2271
  %2506 = vst.msk [vmem:[%s9 + $0xb0] sm:$0xff] %vm748, %v2276
  %2507 = vst.msk [vmem:[%s9 + $0xb8] sm:$0xff] %vm748, %v2281
  %2508 = vst.msk [vmem:[%s9 + $0xc0] sm:$0xff] %vm748, %v2286
  %2509 = vst.msk [vmem:[%s9 + $0xc8] sm:$0xff] %vm748, %v2291
  %2510 = vst.msk [vmem:[%s9 + $0xd0] sm:$0xff] %vm748, %v2296
  %2511 = vst.msk [vmem:[%s9 + $0xd8] sm:$0xff] %vm748, %v2301
  %2512 = vst.msk [vmem:[%s9 + $0xe0] sm:$0xff] %vm748, %v2306
  %2513 = vst.msk [vmem:[%s9 + $0xe8] sm:$0xff] %vm748, %v2311
  %2514 = vst.msk [vmem:[%s9 + $0xf0] sm:$0xff] %vm748, %v2316
  %2515 = vst.msk [vmem:[%s9 + $0xf8] sm:$0xff] %vm748, %v2321
  %2516 = vst.msk [vmem:[%s9 + $0x100] sm:$0xff] %vm748, %v2326
  %2517 = vst.msk [vmem:[%s9 + $0x108] sm:$0xff] %vm748, %v2331
  %2518 = vst.msk [vmem:[%s9 + $0x110] sm:$0xff] %vm748, %v2336
  %2519 = vst.msk [vmem:[%s9 + $0x118] sm:$0xff] %vm748, %v2341
  %2520 = vst.msk [vmem:[%s9 + $0x120] sm:$0xff] %vm748, %v2346
  %2521 = vst.msk [vmem:[%s9 + $0x128] sm:$0xff] %vm748, %v2351
  %2522 = vst.msk [vmem:[%s9 + $0x130] sm:$0xff] %vm748, %v2356
  %2523 = vst.msk [vmem:[%s9 + $0x138] sm:$0xff] %vm748, %v2361
  %2524 = vst.msk [vmem:[%s9 + $0x140] sm:$0xff] %vm748, %v2366
  %2525 = vst.msk [vmem:[%s9 + $0x148] sm:$0xff] %vm748, %v2371
  %2526 = vst.msk [vmem:[%s9 + $0x150] sm:$0xff] %vm748, %v2376
  %2527 = vst.msk [vmem:[%s9 + $0x158] sm:$0xff] %vm748, %v2381
  %2528 = vst.msk [vmem:[%s9 + $0x160] sm:$0xff] %vm748, %v2386
  %2529 = vst.msk [vmem:[%s9 + $0x168] sm:$0xff] %vm748, %v2391
  %2530 = vst.msk [vmem:[%s9 + $0x170] sm:$0xff] %vm748, %v2396
  %2531 = vst.msk [vmem:[%s9 + $0x178] sm:$0xff] %vm748, %v2401
  %2532 = vst.msk [vmem:[%s9 + $0x180] sm:$0xff] %vm748, %v2406
  %2533 = vst.msk [vmem:[%s9 + $0x188] sm:$0xff] %vm748, %v2411
  %2534 = vst.msk [vmem:[%s9 + $0x190] sm:$0xff] %vm748, %v2416
  %2535 = vst.msk [vmem:[%s9 + $0x198] sm:$0xff] %vm748, %v2421
  %2536 = vst.msk [vmem:[%s9 + $0x1a0] sm:$0xff] %vm748, %v2426
  %2537 = vst.msk [vmem:[%s9 + $0x1a8] sm:$0xff] %vm748, %v2431
  %2538 = vst.msk [vmem:[%s9 + $0x1b0] sm:$0xff] %vm748, %v2436
  %2539 = vst.msk [vmem:[%s9 + $0x1b8] sm:$0xff] %vm748, %v2441
  %2540 = vst.msk [vmem:[%s9 + $0x1c0] sm:$0xff] %vm748, %v2446
  %2541 = vst.msk [vmem:[%s9 + $0x1c8] sm:$0xff] %vm748, %v2451
  %2542 = vst.msk [vmem:[%s9 + $0x1d0] sm:$0xff] %vm748, %v2456
  %2543 = vst.msk [vmem:[%s9 + $0x1d8] sm:$0xff] %vm748, %v2461
  %2544 = vst.msk [vmem:[%s9 + $0x1e0] sm:$0xff] %vm748, %v2466
  %2545 = vst.msk [vmem:[%s9 + $0x1e8] sm:$0xff] %vm748, %v2471
  %2546 = vst.msk [vmem:[%s9 + $0x1f0] sm:$0xff] %vm748, %v2476
  %2547 = vst.msk [vmem:[%s9 + $0x1f8] sm:$0xff] %vm748, %v2481
  // Predicated region
  $region30: #{tpu_custom_call.1} parent=0 // pred_check
    _
  $region31: #{tpu_custom_call.1} parent=0 // pred_check_branch
    %2549 = sbr.rel (0) target = $region33
  $region32: #{tpu_custom_call.1} parent=0 // pred_region
    _
  $region33: #{tpu_custom_call.1} parent=0 // pred_fallthru
    _
  // Predicated region
  $region34: #{tpu_custom_call.1} parent=0 // pred_check
    _
  $region35: #{tpu_custom_call.1} parent=0 // pred_check_branch
    %2551 = sbr.rel (0) target = $region37
  $region36: #{tpu_custom_call.1} parent=0 // pred_region
    _
  $region37: #{tpu_custom_call.1} parent=0 // pred_fallthru
    _
  // Predicated region
  $region38: #{tpu_custom_call.1} parent=0 // pred_check
    _
  $region39: #{tpu_custom_call.1} parent=0 // pred_check_branch
    %2553 = sbr.rel (0) target = $region41
  $region40: #{tpu_custom_call.1} parent=0 // pred_region
    _
  $region41: #{tpu_custom_call.1} parent=0 // pred_fallthru
    _
  // Predicated region
  $region42: #{tpu_custom_call.1} parent=0 // pred_check
    _
  $region43: #{tpu_custom_call.1} parent=0 // pred_check_branch
    %2555 = sbr.rel (0) target = $region45
  $region44: #{tpu_custom_call.1} parent=0 // pred_region
    _
  $region45: #{tpu_custom_call.1} parent=0 // pred_fallthru
    _
  // Predicated region
  $region46: #{tpu_custom_call.1} parent=0 // pred_check
    _
  $region47: #{tpu_custom_call.1} parent=0 // pred_check_branch
    %2557 = sbr.rel (0) target = $region49
  $region48: #{tpu_custom_call.1} parent=0 // pred_region
    _
  $region49: #{tpu_custom_call.1} parent=0 // pred_fallthru
    _
  // Predicated region
  $region50: #{tpu_custom_call.1} parent=0 // pred_check
    _
  $region51: #{tpu_custom_call.1} parent=0 // pred_check_branch
    %2559 = sbr.rel (0) target = $region53
  $region52: #{tpu_custom_call.1} parent=0 // pred_region
    _
  $region53: #{tpu_custom_call.1} parent=0 // pred_fallthru
    _

</llo_original>
